<compile_context>
chip_gen: v6e
topology: v6e:2x2x1
jax: 0.10.0
libtpu: 0.0.40
codegen_flags: <defaults>
</compile_context>

<pallas_src>
import functools

import jax
import jax.numpy as jnp
from jax.experimental import pallas as pl
from jax.experimental.pallas import tpu as pltpu


# ----------------------------- kernel helpers -------------------------------

def _layernorm(x, g, b, eps=1e-6):
    # timm ViT uses nn.LayerNorm(eps=1e-6).  Kept in f32 on purpose.
    mu = jnp.mean(x, axis=-1, keepdims=True)
    xc = x - mu
    var = jnp.mean(xc * xc, axis=-1, keepdims=True)
    return xc * jax.lax.rsqrt(var + eps) * g + b


# ------------------------------ fused kernel --------------------------------

def _vit_fused_kernel(patches_ref, add_ref, w_patch_ref, w_qkv_ref, w_proj_ref,
                      w_fc1_ref, w_fc2_ref, b_qkv_ref, b_fc1_ref, vecs_ref,
                      norm_ref, o_ref, *, N, D, S_pad, num_heads, depth):
    """One batch item per grid step: (S_pad, D) activation slab, all layers."""
    S = N + 1
    hd = D // num_heads
    scale = 1.0 / float(hd) ** 0.5

    # ---- patch embed + token assembly: one matmul + one add -----------------
    # patches_ref rows: [0]=zeros (CLS slot), [1..N]=patches, [N+1..]=pad zeros.
    # add_ref rows:     [0]=cls+pos0, [1..N]=pos+patch_bias, tail = 0.
    x = (jnp.dot(patches_ref[0], w_patch_ref[...],
                 preferred_element_type=jnp.float32)
         + add_ref[...])                                     # (S_pad, D) f32

    # Additive key mask: padded key columns get -1e30 so the softmax over
    # S_pad keys equals the softmax over the S real keys (re-applied per layer).
    kidx = jax.lax.broadcasted_iota(jnp.int32, (1, S_pad), 1)
    kbias = jnp.where(kidx < S, 0.0, -1e30).astype(jnp.float32)   # (1, S_pad)

    # depth=2 here: static unroll is fine.
    # TODO(synk): at realistic ViT depth (12+), switch to lax.fori_loop over a
    # stacked-weight first axis (bounded vreg live ranges / code size) and
    # stream per-layer weights with a depth grid axis (emit_pipeline) so VMEM
    # stays bounded on v7x (64 MiB).
    for l in range(depth):
        vec = vecs_ref[l]                                    # (6, D) f32
        ln1_g, ln1_b, bproj = vec[0:1], vec[1:2], vec[2:3]
        ln2_g, ln2_b, bfc2 = vec[3:4], vec[4:5], vec[5:6]

        # --- multi-head self-attention (pre-norm), fused QKV ---
        h1 = _layernorm(x, ln1_g, ln1_b).astype(jnp.bfloat16)
        qkv = (jnp.dot(h1, w_qkv_ref[l], preferred_element_type=jnp.float32)
               + b_qkv_ref[l])                               # (S_pad, 3D) f32
        q = qkv[:, 0:D] * scale                              # scale folded once
        k = qkv[:, D:2 * D]
        v = qkv[:, 2 * D:3 * D]

        heads = []
        for hh in range(num_heads):                          # static; tiny dots
            sl = slice(hh * hd, (hh + 1) * hd)
            qh = q[:, sl].astype(jnp.bfloat16)
            kh = k[:, sl].astype(jnp.bfloat16)
            vh = v[:, sl].astype(jnp.bfloat16)
            s = jnp.einsum('qd,kd->qk', qh, kh,
                           preferred_element_type=jnp.float32) + kbias
            # NOTE: row-max subtraction dropped (review): scores are bounded
            # at this scale and exp(-1e30) underflows to exactly 0 in f32.
            # Re-add `s -= s.max(-1, keepdims=True)` for pretrained weights
            # with large logits.
            p = jnp.exp(s)
            p = p / jnp.sum(p, axis=-1, keepdims=True)       # exact divide
            heads.append(jnp.dot(p.astype(jnp.bfloat16), vh,
                                 preferred_element_type=jnp.float32))
        # Head concat stays inside a single 128-lane tile (D=32); one proj dot.
        attn = jnp.concatenate(heads, axis=-1)               # (S_pad, D) f32
        x = x + (jnp.dot(attn.astype(jnp.bfloat16), w_proj_ref[l],
                         preferred_element_type=jnp.float32) + bproj)

        # --- MLP (pre-norm) ---
        h2 = _layernorm(x, ln2_g, ln2_b).astype(jnp.bfloat16)
        m = (jnp.dot(h2, w_fc1_ref[l], preferred_element_type=jnp.float32)
             + b_fc1_ref[l])
        # TODO(synk): timm nn.GELU is exact erf-GELU; tanh approximation is used
        # for robust EUP lowering (difference ~1e-3 relative).
        m = jax.nn.gelu(m, approximate=True)
        x = x + (jnp.dot(m.astype(jnp.bfloat16), w_fc2_ref[l],
                         preferred_element_type=jnp.float32) + bfc2)

    # ---- final LayerNorm applied to the CLS token only ----
    # (LayerNorm is per-token, so slice-then-norm == norm-then-slice.)
    o_ref[0] = _layernorm(x[0:1, :], norm_ref[0:1], norm_ref[1:2])


# --------------------------------- wrapper ----------------------------------

def extract_patches(x, p):
    # NCHW -> (B, N, C*p*p) with (C, ph, pw) flattening order, exactly matching
    # the Conv2d(kernel=stride=p) patch-embed contraction in timm ViT.
    B, C, H, W = x.shape
    nh, nw = H // p, W // p
    x = x.reshape(B, C, nh, p, nw, p)
    x = x.transpose(0, 2, 4, 1, 3, 5)                        # (B, nh, nw, C, p, p)
    return x.reshape(B, nh * nw, C * p * p)


@functools.partial(jax.jit, static_argnames=("num_heads", "patch"))
def vision_encoder_forward(x, params, *, num_heads, patch):
    """Equivalent of VisionEncoder.forward: vit.forward_features(x)[:, 0, :]."""
    B = x.shape[0]
    # im2col / padding / additive-row construction stay inside this jit so XLA
    # fuses them with the pallas_call prologue (no extra HBM round trip).
    patches = extract_patches(x, patch)                      # (B, N, P) f32
    N, P = patches.shape[1], patches.shape[2]
    D = params["w_patch"].shape[1]
    Dh = params["w_fc1"].shape[2]
    depth = params["w_qkv"].shape[0]
    S = N + 1
    S_pad = ((S + 7) // 8) * 8                               # sublane-aligned rows

    # Row 0 = CLS slot (zeros), rows 1..N = patches, tail = pad zeros.
    patches_pad = jnp.pad(patches, ((0, 0), (1, S_pad - S), (0, 0)))
    patches_pad = patches_pad.astype(jnp.bfloat16)           # (B, S_pad, P)

    # Per-row additive slab (shared across batch): CLS+pos0 / pos+patch_bias / 0.
    cls_pos = params["cls_pos"]                              # (S, D); row0 = cls+pos0
    add_rows = jnp.zeros((S_pad, D), jnp.float32)
    add_rows = add_rows.at[0, :].set(cls_pos[0])
    add_rows = add_rows.at[1:S, :].set(cls_pos[1:] + params["b_patch"][0])

    kernel = functools.partial(_vit_fused_kernel, N=N, D=D, S_pad=S_pad,
                               num_heads=num_heads, depth=depth)

    out = pl.pallas_call(
        kernel,
        grid=(B,),
        in_specs=[
            pl.BlockSpec((1, S_pad, P), lambda b: (b, 0, 0)),      # patches_pad
            pl.BlockSpec((S_pad, D), lambda b: (0, 0)),            # add_rows
            pl.BlockSpec((P, D), lambda b: (0, 0)),                # w_patch
            pl.BlockSpec((depth, D, 3 * D), lambda b: (0, 0, 0)),  # w_qkv
            pl.BlockSpec((depth, D, D), lambda b: (0, 0, 0)),      # w_proj
            pl.BlockSpec((depth, D, Dh), lambda b: (0, 0, 0)),     # w_fc1
            pl.BlockSpec((depth, Dh, D), lambda b: (0, 0, 0)),     # w_fc2
            pl.BlockSpec((depth, 1, 3 * D), lambda b: (0, 0, 0)),  # b_qkv
            pl.BlockSpec((depth, 1, Dh), lambda b: (0, 0, 0)),     # b_fc1
            pl.BlockSpec((depth, 6, D), lambda b: (0, 0, 0)),      # vecs
            pl.BlockSpec((2, D), lambda b: (0, 0)),                # final norm g/b
        ],
        out_specs=pl.BlockSpec((1, 1, D), lambda b: (b, 0, 0)),
        out_shape=jax.ShapeDtypeStruct((B, 1, D), jnp.float32),
        compiler_params=pltpu.CompilerParams(
            dimension_semantics=("parallel",)),               # 2 TCs on v7x
    )(patches_pad, add_rows,
      params["w_patch"], params["w_qkv"], params["w_proj"],
      params["w_fc1"], params["w_fc2"],
      params["b_qkv"], params["b_fc1"], params["vecs"], params["norm"])

    return out.reshape(B, D)


# ------------------------------ parameter init -------------------------------

def init_params(key, *, in_ch=3, patch=8, img=16, embed_dim=32, depth=2,
                mlp_ratio=4):
    N = (img // patch) ** 2
    S = N + 1
    D = embed_dim
    Dh = D * mlp_ratio
    P = in_ch * patch * patch
    keys = jax.random.split(key, 3 + depth)

    def nrm(k, shape):
        return (0.02 * jax.random.normal(k, shape)).astype(jnp.float32)

    cls = nrm(keys[1], (1, D))
    pos = nrm(keys[2], (S, D))
    cls_pos = pos.at[0:1, :].add(cls)                        # row 0 = cls + pos[0]

    w_qkv, w_proj, w_fc1, w_fc2 = [], [], [], []
    vecs, b_qkv, b_fc1 = [], [], []
    for d in range(depth):
        ks = jax.random.split(keys[3 + d], 6)
        # Fused QKV weight: (D, 3D) so the kernel issues one MXU op.
        w_qkv.append(jnp.concatenate([nrm(ks[0], (D, D)), nrm(ks[1], (D, D)),
                                      nrm(ks[2], (D, D))], axis=1))
        w_proj.append(nrm(ks[3], (D, D)))
        w_fc1.append(nrm(ks[4], (D, Dh)))
        w_fc2.append(nrm(ks[5], (Dh, D)))
        # packed per-layer vectors: ln1_g, ln1_b, bproj, ln2_g, ln2_b, bfc2
        vecs.append(jnp.stack([jnp.ones((D,)), jnp.zeros((D,)), jnp.zeros((D,)),
                               jnp.ones((D,)), jnp.zeros((D,)), jnp.zeros((D,))]))
        b_qkv.append(jnp.zeros((1, 3 * D)))
        b_fc1.append(jnp.zeros((1, Dh)))

    return {
        # Matrices feeding the MXU are stored bf16 (halves DMA/VMEM bytes,
        # doubles MXU rate); kernel accumulates in f32.
        "w_patch": nrm(keys[0], (P, D)).astype(jnp.bfloat16),
        "b_patch": jnp.zeros((1, D), jnp.float32),
        "cls_pos": cls_pos.astype(jnp.float32),              # (S, D)
        "w_qkv": jnp.stack(w_qkv).astype(jnp.bfloat16),      # (depth, D, 3D)
        "w_proj": jnp.stack(w_proj).astype(jnp.bfloat16),    # (depth, D, D)
        "w_fc1": jnp.stack(w_fc1).astype(jnp.bfloat16),      # (depth, D, Dh)
        "w_fc2": jnp.stack(w_fc2).astype(jnp.bfloat16),      # (depth, Dh, D)
        "vecs": jnp.stack(vecs).astype(jnp.float32),         # (depth, 6, D)
        "b_qkv": jnp.stack(b_qkv).astype(jnp.float32),       # (depth, 1, 3D)
        "b_fc1": jnp.stack(b_fc1).astype(jnp.float32),       # (depth, 1, Dh)
        "norm": jnp.stack([jnp.ones((D,)), jnp.zeros((D,))]
                          ).astype(jnp.float32),             # (2, D)
    }


# ----------------------------------- main ------------------------------------

if __name__ == "__main__":
    # ViT-tiny-style shapes: B=2, C=3, 16x16 image, patch=8 -> 4 patches (+CLS),
    # embed_dim=32, 4 heads, depth=2.
    B, C, IMG, PATCH = 2, 3, 16, 8
    EMBED, HEADS, DEPTH = 32, 4, 2

    key = jax.random.PRNGKey(0)
    pkey, xkey = jax.random.split(key)
    params = init_params(pkey, in_ch=C, patch=PATCH, img=IMG,
                         embed_dim=EMBED, depth=DEPTH)
    x = jax.random.normal(xkey, (B, C, IMG, IMG), dtype=jnp.float32)

    out = vision_encoder_forward(x, params, num_heads=HEADS, patch=PATCH)
    jax.block_until_ready(out)
    assert out.shape == (B, EMBED)
    print("KERNEL_OK")
</pallas_src>

<mosaic_0001>
module attributes {stable_mosaic.version = 11 : i64} {
  func.func @_vit_fused_kernel(%arg0: i32, %arg1: memref<1x8x192xbf16, #tpu.memory_space<vmem>>, %arg2: memref<8x32xf32, #tpu.memory_space<vmem>>, %arg3: memref<192x32xbf16, #tpu.memory_space<vmem>>, %arg4: memref<2x32x96xbf16, #tpu.memory_space<vmem>>, %arg5: memref<2x32x32xbf16, #tpu.memory_space<vmem>>, %arg6: memref<2x32x128xbf16, #tpu.memory_space<vmem>>, %arg7: memref<2x128x32xbf16, #tpu.memory_space<vmem>>, %arg8: memref<2x1x96xf32, #tpu.memory_space<vmem>>, %arg9: memref<2x1x128xf32, #tpu.memory_space<vmem>>, %arg10: memref<2x6x32xf32, #tpu.memory_space<vmem>>, %arg11: memref<2x32xf32, #tpu.memory_space<vmem>>, %arg12: memref<1x1x32xf32, #tpu.memory_space<vmem>>) attributes {dimension_semantics = [#tpu.dimension_semantics<parallel>], iteration_bounds = array<i64: 2>, scalar_prefetch = 0 : i64, scratch_operands = 0 : i64, tpu.core_type = #tpu.core_type<tc>, window_params = [{transform_indices = @transform_0, window_bounds = array<i64: 1, 8, 192>}, {pipeline_mode = #tpu.pipeline_mode<synchronous>, transform_indices = @transform_1, window_bounds = array<i64: 8, 32>}, {pipeline_mode = #tpu.pipeline_mode<synchronous>, transform_indices = @transform_2, window_bounds = array<i64: 192, 32>}, {pipeline_mode = #tpu.pipeline_mode<synchronous>, transform_indices = @transform_3, window_bounds = array<i64: 2, 32, 96>}, {pipeline_mode = #tpu.pipeline_mode<synchronous>, transform_indices = @transform_4, window_bounds = array<i64: 2, 32, 32>}, {pipeline_mode = #tpu.pipeline_mode<synchronous>, transform_indices = @transform_5, window_bounds = array<i64: 2, 32, 128>}, {pipeline_mode = #tpu.pipeline_mode<synchronous>, transform_indices = @transform_6, window_bounds = array<i64: 2, 128, 32>}, {pipeline_mode = #tpu.pipeline_mode<synchronous>, transform_indices = @transform_7, window_bounds = array<i64: 2, 1, 96>}, {pipeline_mode = #tpu.pipeline_mode<synchronous>, transform_indices = @transform_8, window_bounds = array<i64: 2, 1, 128>}, {pipeline_mode = #tpu.pipeline_mode<synchronous>, transform_indices = @transform_9, window_bounds = array<i64: 2, 6, 32>}, {pipeline_mode = #tpu.pipeline_mode<synchronous>, transform_indices = @transform_10, window_bounds = array<i64: 2, 32>}, {transform_indices = @transform_11, window_bounds = array<i64: 1, 1, 32>}]} {
    %c0 = arith.constant 0 : index
    %c0_0 = arith.constant 0 : index
    %c0_1 = arith.constant 0 : index
    %0 = vector.load %arg1[%c0, %c0_0, %c0_1] : memref<1x8x192xbf16, #tpu.memory_space<vmem>>, vector<1x8x192xbf16>
    %1 = vector.shape_cast %0 : vector<1x8x192xbf16> to vector<8x192xbf16>
    %c0_2 = arith.constant 0 : index
    %c0_3 = arith.constant 0 : index
    %2 = vector.load %arg3[%c0_2, %c0_3] : memref<192x32xbf16, #tpu.memory_space<vmem>>, vector<192x32xbf16>
    %cst = arith.constant dense<0.000000e+00> : vector<8x32xf32>
    %3 = tpu.matmul %1, %2, %cst {dimension_numbers = #tpu.dot_dimension_numbers<[1], [0], [0], [1], [0, 0, 1, 1], [], []>} : vector<8x192xbf16>, vector<192x32xbf16>, vector<8x32xf32> -> vector<8x32xf32>
    %c0_4 = arith.constant 0 : index
    %c0_5 = arith.constant 0 : index
    %4 = vector.load %arg2[%c0_4, %c0_5] : memref<8x32xf32, #tpu.memory_space<vmem>>, vector<8x32xf32>
    %5 = arith.addf %3, %4 : vector<8x32xf32>
    %6 = tpu.iota {dimensions = array<i32: 1>} : vector<1x8xi32>
    %c5_i32 = arith.constant 5 : i32
    %7 = vector.broadcast %c5_i32 : i32 to vector<1x8xi32>
    %8 = arith.cmpi slt, %6, %7 : vector<1x8xi32>
    %cst_6 = arith.constant 0.000000e+00 : f32
    %cst_7 = arith.constant -1.000000e+30 : f32
    %9 = vector.broadcast %cst_6 : f32 to vector<1x8xf32>
    %10 = vector.broadcast %cst_7 : f32 to vector<1x8xf32>
    %11 = arith.select %8, %9, %10 : vector<1x8xi1>, vector<1x8xf32>
    %c0_8 = arith.constant 0 : index
    %c0_9 = arith.constant 0 : index
    %c0_10 = arith.constant 0 : index
    %12 = vector.load %arg10[%c0_8, %c0_9, %c0_10] : memref<2x6x32xf32, #tpu.memory_space<vmem>>, vector<1x6x32xf32>
    %13 = vector.shape_cast %12 : vector<1x6x32xf32> to vector<6x32xf32>
    %14 = vector.extract_strided_slice %13 {offsets = [0, 0], sizes = [1, 32], strides = [1, 1]} : vector<6x32xf32> to vector<1x32xf32>
    %15 = vector.extract_strided_slice %13 {offsets = [1, 0], sizes = [1, 32], strides = [1, 1]} : vector<6x32xf32> to vector<1x32xf32>
    %16 = vector.extract_strided_slice %13 {offsets = [2, 0], sizes = [1, 32], strides = [1, 1]} : vector<6x32xf32> to vector<1x32xf32>
    %17 = vector.extract_strided_slice %13 {offsets = [3, 0], sizes = [1, 32], strides = [1, 1]} : vector<6x32xf32> to vector<1x32xf32>
    %18 = vector.extract_strided_slice %13 {offsets = [4, 0], sizes = [1, 32], strides = [1, 1]} : vector<6x32xf32> to vector<1x32xf32>
    %19 = vector.extract_strided_slice %13 {offsets = [5, 0], sizes = [1, 32], strides = [1, 1]} : vector<6x32xf32> to vector<1x32xf32>
    %cst_11 = arith.constant dense<0.000000e+00> : vector<8xf32>
    %20 = vector.multi_reduction <add>, %5, %cst_11 [1] : vector<8x32xf32> to vector<8xf32>
    %21 = vector.shape_cast %20 : vector<8xf32> to vector<8x1xf32>
    %cst_12 = arith.constant 3.200000e+01 : f32
    %22 = vector.broadcast %cst_12 : f32 to vector<8x1xf32>
    %23 = arith.divf %21, %22 : vector<8x1xf32>
    %24 = vector.broadcast %23 : vector<8x1xf32> to vector<8x32xf32>
    %25 = arith.subf %5, %24 : vector<8x32xf32>
    %26 = arith.mulf %25, %25 : vector<8x32xf32>
    %cst_13 = arith.constant dense<0.000000e+00> : vector<8xf32>
    %27 = vector.multi_reduction <add>, %26, %cst_13 [1] : vector<8x32xf32> to vector<8xf32>
    %28 = vector.shape_cast %27 : vector<8xf32> to vector<8x1xf32>
    %cst_14 = arith.constant 3.200000e+01 : f32
    %29 = vector.broadcast %cst_14 : f32 to vector<8x1xf32>
    %30 = arith.divf %28, %29 : vector<8x1xf32>
    %cst_15 = arith.constant 9.99999997E-7 : f32
    %31 = vector.broadcast %cst_15 : f32 to vector<8x1xf32>
    %32 = arith.addf %30, %31 : vector<8x1xf32>
    %33 = math.rsqrt %32 : vector<8x1xf32>
    %34 = vector.broadcast %33 : vector<8x1xf32> to vector<8x32xf32>
    %35 = arith.mulf %25, %34 : vector<8x32xf32>
    %36 = vector.broadcast %14 : vector<1x32xf32> to vector<8x32xf32>
    %37 = arith.mulf %35, %36 : vector<8x32xf32>
    %38 = vector.broadcast %15 : vector<1x32xf32> to vector<8x32xf32>
    %39 = arith.addf %37, %38 : vector<8x32xf32>
    %40 = arith.truncf %39 : vector<8x32xf32> to vector<8x32xbf16>
    %c0_16 = arith.constant 0 : index
    %c0_17 = arith.constant 0 : index
    %c0_18 = arith.constant 0 : index
    %41 = vector.load %arg4[%c0_16, %c0_17, %c0_18] : memref<2x32x96xbf16, #tpu.memory_space<vmem>>, vector<1x32x96xbf16>
    %42 = vector.shape_cast %41 : vector<1x32x96xbf16> to vector<32x96xbf16>
    %cst_19 = arith.constant dense<0.000000e+00> : vector<8x96xf32>
    %43 = tpu.matmul %40, %42, %cst_19 {dimension_numbers = #tpu.dot_dimension_numbers<[1], [0], [0], [1], [0, 0, 1, 1], [], []>} : vector<8x32xbf16>, vector<32x96xbf16>, vector<8x96xf32> -> vector<8x96xf32>
    %c0_20 = arith.constant 0 : index
    %c0_21 = arith.constant 0 : index
    %c0_22 = arith.constant 0 : index
    %44 = vector.load %arg8[%c0_20, %c0_21, %c0_22] : memref<2x1x96xf32, #tpu.memory_space<vmem>>, vector<1x1x96xf32>
    %45 = vector.shape_cast %44 : vector<1x1x96xf32> to vector<1x96xf32>
    %46 = vector.broadcast %45 : vector<1x96xf32> to vector<8x96xf32>
    %47 = arith.addf %43, %46 : vector<8x96xf32>
    %48 = vector.extract_strided_slice %47 {offsets = [0, 0], sizes = [8, 32], strides = [1, 1]} : vector<8x96xf32> to vector<8x32xf32>
    %cst_23 = arith.constant 0.353553385 : f32
    %49 = vector.broadcast %cst_23 : f32 to vector<8x32xf32>
    %50 = arith.mulf %48, %49 : vector<8x32xf32>
    %51 = vector.extract_strided_slice %47 {offsets = [0, 32], sizes = [8, 32], strides = [1, 1]} : vector<8x96xf32> to vector<8x32xf32>
    %52 = vector.extract_strided_slice %47 {offsets = [0, 64], sizes = [8, 32], strides = [1, 1]} : vector<8x96xf32> to vector<8x32xf32>
    %53 = vector.extract_strided_slice %50 {offsets = [0, 0], sizes = [8, 8], strides = [1, 1]} : vector<8x32xf32> to vector<8x8xf32>
    %54 = arith.truncf %53 : vector<8x8xf32> to vector<8x8xbf16>
    %55 = vector.extract_strided_slice %51 {offsets = [0, 0], sizes = [8, 8], strides = [1, 1]} : vector<8x32xf32> to vector<8x8xf32>
    %56 = arith.truncf %55 : vector<8x8xf32> to vector<8x8xbf16>
    %57 = vector.extract_strided_slice %52 {offsets = [0, 0], sizes = [8, 8], strides = [1, 1]} : vector<8x32xf32> to vector<8x8xf32>
    %58 = arith.truncf %57 : vector<8x8xf32> to vector<8x8xbf16>
    "tpu.trace_start"() <{level = 10 : i32, message = "qd,kd->qk"}> : () -> ()
    %cst_24 = arith.constant dense<0.000000e+00> : vector<8x8xf32>
    %59 = tpu.matmul %54, %56, %cst_24 {dimension_numbers = #tpu.dot_dimension_numbers<[1], [1], [0], [0], [0, 0, 1, 0], [], []>} : vector<8x8xbf16>, vector<8x8xbf16>, vector<8x8xf32> -> vector<8x8xf32>
    "tpu.trace_stop"() : () -> ()
    %60 = vector.broadcast %11 : vector<1x8xf32> to vector<8x8xf32>
    %61 = arith.addf %59, %60 : vector<8x8xf32>
    %62 = math.exp %61 : vector<8x8xf32>
    %cst_25 = arith.constant dense<0.000000e+00> : vector<8xf32>
    %63 = vector.multi_reduction <add>, %62, %cst_25 [1] : vector<8x8xf32> to vector<8xf32>
    %64 = vector.shape_cast %63 : vector<8xf32> to vector<8x1xf32>
    %65 = vector.broadcast %64 : vector<8x1xf32> to vector<8x8xf32>
    %66 = arith.divf %62, %65 : vector<8x8xf32>
    %67 = arith.truncf %66 : vector<8x8xf32> to vector<8x8xbf16>
    %cst_26 = arith.constant dense<0.000000e+00> : vector<8x8xf32>
    %68 = tpu.matmul %67, %58, %cst_26 {dimension_numbers = #tpu.dot_dimension_numbers<[1], [0], [0], [1], [0, 0, 1, 1], [], []>} : vector<8x8xbf16>, vector<8x8xbf16>, vector<8x8xf32> -> vector<8x8xf32>
    %69 = vector.extract_strided_slice %50 {offsets = [0, 8], sizes = [8, 8], strides = [1, 1]} : vector<8x32xf32> to vector<8x8xf32>
    %70 = arith.truncf %69 : vector<8x8xf32> to vector<8x8xbf16>
    %71 = vector.extract_strided_slice %51 {offsets = [0, 8], sizes = [8, 8], strides = [1, 1]} : vector<8x32xf32> to vector<8x8xf32>
    %72 = arith.truncf %71 : vector<8x8xf32> to vector<8x8xbf16>
    %73 = vector.extract_strided_slice %52 {offsets = [0, 8], sizes = [8, 8], strides = [1, 1]} : vector<8x32xf32> to vector<8x8xf32>
    %74 = arith.truncf %73 : vector<8x8xf32> to vector<8x8xbf16>
    "tpu.trace_start"() <{level = 10 : i32, message = "qd,kd->qk"}> : () -> ()
    %cst_27 = arith.constant dense<0.000000e+00> : vector<8x8xf32>
    %75 = tpu.matmul %70, %72, %cst_27 {dimension_numbers = #tpu.dot_dimension_numbers<[1], [1], [0], [0], [0, 0, 1, 0], [], []>} : vector<8x8xbf16>, vector<8x8xbf16>, vector<8x8xf32> -> vector<8x8xf32>
    "tpu.trace_stop"() : () -> ()
    %76 = vector.broadcast %11 : vector<1x8xf32> to vector<8x8xf32>
    %77 = arith.addf %75, %76 : vector<8x8xf32>
    %78 = math.exp %77 : vector<8x8xf32>
    %cst_28 = arith.constant dense<0.000000e+00> : vector<8xf32>
    %79 = vector.multi_reduction <add>, %78, %cst_28 [1] : vector<8x8xf32> to vector<8xf32>
    %80 = vector.shape_cast %79 : vector<8xf32> to vector<8x1xf32>
    %81 = vector.broadcast %80 : vector<8x1xf32> to vector<8x8xf32>
    %82 = arith.divf %78, %81 : vector<8x8xf32>
    %83 = arith.truncf %82 : vector<8x8xf32> to vector<8x8xbf16>
    %cst_29 = arith.constant dense<0.000000e+00> : vector<8x8xf32>
    %84 = tpu.matmul %83, %74, %cst_29 {dimension_numbers = #tpu.dot_dimension_numbers<[1], [0], [0], [1], [0, 0, 1, 1], [], []>} : vector<8x8xbf16>, vector<8x8xbf16>, vector<8x8xf32> -> vector<8x8xf32>
    %85 = vector.extract_strided_slice %50 {offsets = [0, 16], sizes = [8, 8], strides = [1, 1]} : vector<8x32xf32> to vector<8x8xf32>
    %86 = arith.truncf %85 : vector<8x8xf32> to vector<8x8xbf16>
    %87 = vector.extract_strided_slice %51 {offsets = [0, 16], sizes = [8, 8], strides = [1, 1]} : vector<8x32xf32> to vector<8x8xf32>
    %88 = arith.truncf %87 : vector<8x8xf32> to vector<8x8xbf16>
    %89 = vector.extract_strided_slice %52 {offsets = [0, 16], sizes = [8, 8], strides = [1, 1]} : vector<8x32xf32> to vector<8x8xf32>
    %90 = arith.truncf %89 : vector<8x8xf32> to vector<8x8xbf16>
    "tpu.trace_start"() <{level = 10 : i32, message = "qd,kd->qk"}> : () -> ()
    %cst_30 = arith.constant dense<0.000000e+00> : vector<8x8xf32>
    %91 = tpu.matmul %86, %88, %cst_30 {dimension_numbers = #tpu.dot_dimension_numbers<[1], [1], [0], [0], [0, 0, 1, 0], [], []>} : vector<8x8xbf16>, vector<8x8xbf16>, vector<8x8xf32> -> vector<8x8xf32>
    "tpu.trace_stop"() : () -> ()
    %92 = vector.broadcast %11 : vector<1x8xf32> to vector<8x8xf32>
    %93 = arith.addf %91, %92 : vector<8x8xf32>
    %94 = math.exp %93 : vector<8x8xf32>
    %cst_31 = arith.constant dense<0.000000e+00> : vector<8xf32>
    %95 = vector.multi_reduction <add>, %94, %cst_31 [1] : vector<8x8xf32> to vector<8xf32>
    %96 = vector.shape_cast %95 : vector<8xf32> to vector<8x1xf32>
    %97 = vector.broadcast %96 : vector<8x1xf32> to vector<8x8xf32>
    %98 = arith.divf %94, %97 : vector<8x8xf32>
    %99 = arith.truncf %98 : vector<8x8xf32> to vector<8x8xbf16>
    %cst_32 = arith.constant dense<0.000000e+00> : vector<8x8xf32>
    %100 = tpu.matmul %99, %90, %cst_32 {dimension_numbers = #tpu.dot_dimension_numbers<[1], [0], [0], [1], [0, 0, 1, 1], [], []>} : vector<8x8xbf16>, vector<8x8xbf16>, vector<8x8xf32> -> vector<8x8xf32>
    %101 = vector.extract_strided_slice %50 {offsets = [0, 24], sizes = [8, 8], strides = [1, 1]} : vector<8x32xf32> to vector<8x8xf32>
    %102 = arith.truncf %101 : vector<8x8xf32> to vector<8x8xbf16>
    %103 = vector.extract_strided_slice %51 {offsets = [0, 24], sizes = [8, 8], strides = [1, 1]} : vector<8x32xf32> to vector<8x8xf32>
    %104 = arith.truncf %103 : vector<8x8xf32> to vector<8x8xbf16>
    %105 = vector.extract_strided_slice %52 {offsets = [0, 24], sizes = [8, 8], strides = [1, 1]} : vector<8x32xf32> to vector<8x8xf32>
    %106 = arith.truncf %105 : vector<8x8xf32> to vector<8x8xbf16>
    "tpu.trace_start"() <{level = 10 : i32, message = "qd,kd->qk"}> : () -> ()
    %cst_33 = arith.constant dense<0.000000e+00> : vector<8x8xf32>
    %107 = tpu.matmul %102, %104, %cst_33 {dimension_numbers = #tpu.dot_dimension_numbers<[1], [1], [0], [0], [0, 0, 1, 0], [], []>} : vector<8x8xbf16>, vector<8x8xbf16>, vector<8x8xf32> -> vector<8x8xf32>
    "tpu.trace_stop"() : () -> ()
    %108 = vector.broadcast %11 : vector<1x8xf32> to vector<8x8xf32>
    %109 = arith.addf %107, %108 : vector<8x8xf32>
    %110 = math.exp %109 : vector<8x8xf32>
    %cst_34 = arith.constant dense<0.000000e+00> : vector<8xf32>
    %111 = vector.multi_reduction <add>, %110, %cst_34 [1] : vector<8x8xf32> to vector<8xf32>
    %112 = vector.shape_cast %111 : vector<8xf32> to vector<8x1xf32>
    %113 = vector.broadcast %112 : vector<8x1xf32> to vector<8x8xf32>
    %114 = arith.divf %110, %113 : vector<8x8xf32>
    %115 = arith.truncf %114 : vector<8x8xf32> to vector<8x8xbf16>
    %cst_35 = arith.constant dense<0.000000e+00> : vector<8x8xf32>
    %116 = tpu.matmul %115, %106, %cst_35 {dimension_numbers = #tpu.dot_dimension_numbers<[1], [0], [0], [1], [0, 0, 1, 1], [], []>} : vector<8x8xbf16>, vector<8x8xbf16>, vector<8x8xf32> -> vector<8x8xf32>
    %117 = tpu.concatenate %68, %84, %100, %116 in 1 : vector<8x8xf32>, vector<8x8xf32>, vector<8x8xf32>, vector<8x8xf32> -> vector<8x32xf32>
    %118 = arith.truncf %117 : vector<8x32xf32> to vector<8x32xbf16>
    %c0_36 = arith.constant 0 : index
    %c0_37 = arith.constant 0 : index
    %c0_38 = arith.constant 0 : index
    %119 = vector.load %arg5[%c0_36, %c0_37, %c0_38] : memref<2x32x32xbf16, #tpu.memory_space<vmem>>, vector<1x32x32xbf16>
    %120 = vector.shape_cast %119 : vector<1x32x32xbf16> to vector<32x32xbf16>
    %cst_39 = arith.constant dense<0.000000e+00> : vector<8x32xf32>
    %121 = tpu.matmul %118, %120, %cst_39 {dimension_numbers = #tpu.dot_dimension_numbers<[1], [0], [0], [1], [0, 0, 1, 1], [], []>} : vector<8x32xbf16>, vector<32x32xbf16>, vector<8x32xf32> -> vector<8x32xf32>
    %122 = vector.broadcast %16 : vector<1x32xf32> to vector<8x32xf32>
    %123 = arith.addf %121, %122 : vector<8x32xf32>
    %124 = arith.addf %5, %123 : vector<8x32xf32>
    %cst_40 = arith.constant dense<0.000000e+00> : vector<8xf32>
    %125 = vector.multi_reduction <add>, %124, %cst_40 [1] : vector<8x32xf32> to vector<8xf32>
    %126 = vector.shape_cast %125 : vector<8xf32> to vector<8x1xf32>
    %cst_41 = arith.constant 3.200000e+01 : f32
    %127 = vector.broadcast %cst_41 : f32 to vector<8x1xf32>
    %128 = arith.divf %126, %127 : vector<8x1xf32>
    %129 = vector.broadcast %128 : vector<8x1xf32> to vector<8x32xf32>
    %130 = arith.subf %124, %129 : vector<8x32xf32>
    %131 = arith.mulf %130, %130 : vector<8x32xf32>
    %cst_42 = arith.constant dense<0.000000e+00> : vector<8xf32>
    %132 = vector.multi_reduction <add>, %131, %cst_42 [1] : vector<8x32xf32> to vector<8xf32>
    %133 = vector.shape_cast %132 : vector<8xf32> to vector<8x1xf32>
    %cst_43 = arith.constant 3.200000e+01 : f32
    %134 = vector.broadcast %cst_43 : f32 to vector<8x1xf32>
    %135 = arith.divf %133, %134 : vector<8x1xf32>
    %cst_44 = arith.constant 9.99999997E-7 : f32
    %136 = vector.broadcast %cst_44 : f32 to vector<8x1xf32>
    %137 = arith.addf %135, %136 : vector<8x1xf32>
    %138 = math.rsqrt %137 : vector<8x1xf32>
    %139 = vector.broadcast %138 : vector<8x1xf32> to vector<8x32xf32>
    %140 = arith.mulf %130, %139 : vector<8x32xf32>
    %141 = vector.broadcast %17 : vector<1x32xf32> to vector<8x32xf32>
    %142 = arith.mulf %140, %141 : vector<8x32xf32>
    %143 = vector.broadcast %18 : vector<1x32xf32> to vector<8x32xf32>
    %144 = arith.addf %142, %143 : vector<8x32xf32>
    %145 = arith.truncf %144 : vector<8x32xf32> to vector<8x32xbf16>
    %c0_45 = arith.constant 0 : index
    %c0_46 = arith.constant 0 : index
    %c0_47 = arith.constant 0 : index
    %146 = vector.load %arg6[%c0_45, %c0_46, %c0_47] : memref<2x32x128xbf16, #tpu.memory_space<vmem>>, vector<1x32x128xbf16>
    %147 = vector.shape_cast %146 : vector<1x32x128xbf16> to vector<32x128xbf16>
    %cst_48 = arith.constant dense<0.000000e+00> : vector<8x128xf32>
    %148 = tpu.matmul %145, %147, %cst_48 {dimension_numbers = #tpu.dot_dimension_numbers<[1], [0], [0], [1], [0, 0, 1, 1], [], []>} : vector<8x32xbf16>, vector<32x128xbf16>, vector<8x128xf32> -> vector<8x128xf32>
    %c0_49 = arith.constant 0 : index
    %c0_50 = arith.constant 0 : index
    %c0_51 = arith.constant 0 : index
    %149 = vector.load %arg9[%c0_49, %c0_50, %c0_51] : memref<2x1x128xf32, #tpu.memory_space<vmem>>, vector<1x1x128xf32>
    %150 = vector.shape_cast %149 : vector<1x1x128xf32> to vector<1x128xf32>
    %151 = vector.broadcast %150 : vector<1x128xf32> to vector<8x128xf32>
    %152 = arith.addf %148, %151 : vector<8x128xf32>
    %153 = arith.mulf %152, %152 : vector<8x128xf32>
    %154 = arith.mulf %152, %153 : vector<8x128xf32>
    %cst_52 = arith.constant 4.471500e-02 : f32
    %155 = vector.broadcast %cst_52 : f32 to vector<8x128xf32>
    %156 = arith.mulf %155, %154 : vector<8x128xf32>
    %157 = arith.addf %152, %156 : vector<8x128xf32>
    %cst_53 = arith.constant 0.797884583 : f32
    %158 = vector.broadcast %cst_53 : f32 to vector<8x128xf32>
    %159 = arith.mulf %158, %157 : vector<8x128xf32>
    %160 = math.tanh %159 : vector<8x128xf32>
    %cst_54 = arith.constant 1.000000e+00 : f32
    %161 = vector.broadcast %cst_54 : f32 to vector<8x128xf32>
    %162 = arith.addf %161, %160 : vector<8x128xf32>
    %cst_55 = arith.constant 5.000000e-01 : f32
    %163 = vector.broadcast %cst_55 : f32 to vector<8x128xf32>
    %164 = arith.mulf %163, %162 : vector<8x128xf32>
    %165 = arith.mulf %152, %164 : vector<8x128xf32>
    %166 = arith.truncf %165 : vector<8x128xf32> to vector<8x128xbf16>
    %c0_56 = arith.constant 0 : index
    %c0_57 = arith.constant 0 : index
    %c0_58 = arith.constant 0 : index
    %167 = vector.load %arg7[%c0_56, %c0_57, %c0_58] : memref<2x128x32xbf16, #tpu.memory_space<vmem>>, vector<1x128x32xbf16>
    %168 = vector.shape_cast %167 : vector<1x128x32xbf16> to vector<128x32xbf16>
    %cst_59 = arith.constant dense<0.000000e+00> : vector<8x32xf32>
    %169 = tpu.matmul %166, %168, %cst_59 {dimension_numbers = #tpu.dot_dimension_numbers<[1], [0], [0], [1], [0, 0, 1, 1], [], []>} : vector<8x128xbf16>, vector<128x32xbf16>, vector<8x32xf32> -> vector<8x32xf32>
    %170 = vector.broadcast %19 : vector<1x32xf32> to vector<8x32xf32>
    %171 = arith.addf %169, %170 : vector<8x32xf32>
    %172 = arith.addf %124, %171 : vector<8x32xf32>
    %c1 = arith.constant 1 : index
    %c0_60 = arith.constant 0 : index
    %c0_61 = arith.constant 0 : index
    %173 = vector.load %arg10[%c1, %c0_60, %c0_61] : memref<2x6x32xf32, #tpu.memory_space<vmem>>, vector<1x6x32xf32>
    %174 = vector.shape_cast %173 : vector<1x6x32xf32> to vector<6x32xf32>
    %175 = vector.extract_strided_slice %174 {offsets = [0, 0], sizes = [1, 32], strides = [1, 1]} : vector<6x32xf32> to vector<1x32xf32>
    %176 = vector.extract_strided_slice %174 {offsets = [1, 0], sizes = [1, 32], strides = [1, 1]} : vector<6x32xf32> to vector<1x32xf32>
    %177 = vector.extract_strided_slice %174 {offsets = [2, 0], sizes = [1, 32], strides = [1, 1]} : vector<6x32xf32> to vector<1x32xf32>
    %178 = vector.extract_strided_slice %174 {offsets = [3, 0], sizes = [1, 32], strides = [1, 1]} : vector<6x32xf32> to vector<1x32xf32>
    %179 = vector.extract_strided_slice %174 {offsets = [4, 0], sizes = [1, 32], strides = [1, 1]} : vector<6x32xf32> to vector<1x32xf32>
    %180 = vector.extract_strided_slice %174 {offsets = [5, 0], sizes = [1, 32], strides = [1, 1]} : vector<6x32xf32> to vector<1x32xf32>
    %cst_62 = arith.constant dense<0.000000e+00> : vector<8xf32>
    %181 = vector.multi_reduction <add>, %172, %cst_62 [1] : vector<8x32xf32> to vector<8xf32>
    %182 = vector.shape_cast %181 : vector<8xf32> to vector<8x1xf32>
    %cst_63 = arith.constant 3.200000e+01 : f32
    %183 = vector.broadcast %cst_63 : f32 to vector<8x1xf32>
    %184 = arith.divf %182, %183 : vector<8x1xf32>
    %185 = vector.broadcast %184 : vector<8x1xf32> to vector<8x32xf32>
    %186 = arith.subf %172, %185 : vector<8x32xf32>
    %187 = arith.mulf %186, %186 : vector<8x32xf32>
    %cst_64 = arith.constant dense<0.000000e+00> : vector<8xf32>
    %188 = vector.multi_reduction <add>, %187, %cst_64 [1] : vector<8x32xf32> to vector<8xf32>
    %189 = vector.shape_cast %188 : vector<8xf32> to vector<8x1xf32>
    %cst_65 = arith.constant 3.200000e+01 : f32
    %190 = vector.broadcast %cst_65 : f32 to vector<8x1xf32>
    %191 = arith.divf %189, %190 : vector<8x1xf32>
    %cst_66 = arith.constant 9.99999997E-7 : f32
    %192 = vector.broadcast %cst_66 : f32 to vector<8x1xf32>
    %193 = arith.addf %191, %192 : vector<8x1xf32>
    %194 = math.rsqrt %193 : vector<8x1xf32>
    %195 = vector.broadcast %194 : vector<8x1xf32> to vector<8x32xf32>
    %196 = arith.mulf %186, %195 : vector<8x32xf32>
    %197 = vector.broadcast %175 : vector<1x32xf32> to vector<8x32xf32>
    %198 = arith.mulf %196, %197 : vector<8x32xf32>
    %199 = vector.broadcast %176 : vector<1x32xf32> to vector<8x32xf32>
    %200 = arith.addf %198, %199 : vector<8x32xf32>
    %201 = arith.truncf %200 : vector<8x32xf32> to vector<8x32xbf16>
    %c1_67 = arith.constant 1 : index
    %c0_68 = arith.constant 0 : index
    %c0_69 = arith.constant 0 : index
    %202 = vector.load %arg4[%c1_67, %c0_68, %c0_69] : memref<2x32x96xbf16, #tpu.memory_space<vmem>>, vector<1x32x96xbf16>
    %203 = vector.shape_cast %202 : vector<1x32x96xbf16> to vector<32x96xbf16>
    %cst_70 = arith.constant dense<0.000000e+00> : vector<8x96xf32>
    %204 = tpu.matmul %201, %203, %cst_70 {dimension_numbers = #tpu.dot_dimension_numbers<[1], [0], [0], [1], [0, 0, 1, 1], [], []>} : vector<8x32xbf16>, vector<32x96xbf16>, vector<8x96xf32> -> vector<8x96xf32>
    %c1_71 = arith.constant 1 : index
    %c0_72 = arith.constant 0 : index
    %c0_73 = arith.constant 0 : index
    %205 = vector.load %arg8[%c1_71, %c0_72, %c0_73] : memref<2x1x96xf32, #tpu.memory_space<vmem>>, vector<1x1x96xf32>
    %206 = vector.shape_cast %205 : vector<1x1x96xf32> to vector<1x96xf32>
    %207 = vector.broadcast %206 : vector<1x96xf32> to vector<8x96xf32>
    %208 = arith.addf %204, %207 : vector<8x96xf32>
    %209 = vector.extract_strided_slice %208 {offsets = [0, 0], sizes = [8, 32], strides = [1, 1]} : vector<8x96xf32> to vector<8x32xf32>
    %cst_74 = arith.constant 0.353553385 : f32
    %210 = vector.broadcast %cst_74 : f32 to vector<8x32xf32>
    %211 = arith.mulf %209, %210 : vector<8x32xf32>
    %212 = vector.extract_strided_slice %208 {offsets = [0, 32], sizes = [8, 32], strides = [1, 1]} : vector<8x96xf32> to vector<8x32xf32>
    %213 = vector.extract_strided_slice %208 {offsets = [0, 64], sizes = [8, 32], strides = [1, 1]} : vector<8x96xf32> to vector<8x32xf32>
    %214 = vector.extract_strided_slice %211 {offsets = [0, 0], sizes = [8, 8], strides = [1, 1]} : vector<8x32xf32> to vector<8x8xf32>
    %215 = arith.truncf %214 : vector<8x8xf32> to vector<8x8xbf16>
    %216 = vector.extract_strided_slice %212 {offsets = [0, 0], sizes = [8, 8], strides = [1, 1]} : vector<8x32xf32> to vector<8x8xf32>
    %217 = arith.truncf %216 : vector<8x8xf32> to vector<8x8xbf16>
    %218 = vector.extract_strided_slice %213 {offsets = [0, 0], sizes = [8, 8], strides = [1, 1]} : vector<8x32xf32> to vector<8x8xf32>
    %219 = arith.truncf %218 : vector<8x8xf32> to vector<8x8xbf16>
    "tpu.trace_start"() <{level = 10 : i32, message = "qd,kd->qk"}> : () -> ()
    %cst_75 = arith.constant dense<0.000000e+00> : vector<8x8xf32>
    %220 = tpu.matmul %215, %217, %cst_75 {dimension_numbers = #tpu.dot_dimension_numbers<[1], [1], [0], [0], [0, 0, 1, 0], [], []>} : vector<8x8xbf16>, vector<8x8xbf16>, vector<8x8xf32> -> vector<8x8xf32>
    "tpu.trace_stop"() : () -> ()
    %221 = vector.broadcast %11 : vector<1x8xf32> to vector<8x8xf32>
    %222 = arith.addf %220, %221 : vector<8x8xf32>
    %223 = math.exp %222 : vector<8x8xf32>
    %cst_76 = arith.constant dense<0.000000e+00> : vector<8xf32>
    %224 = vector.multi_reduction <add>, %223, %cst_76 [1] : vector<8x8xf32> to vector<8xf32>
    %225 = vector.shape_cast %224 : vector<8xf32> to vector<8x1xf32>
    %226 = vector.broadcast %225 : vector<8x1xf32> to vector<8x8xf32>
    %227 = arith.divf %223, %226 : vector<8x8xf32>
    %228 = arith.truncf %227 : vector<8x8xf32> to vector<8x8xbf16>
    %cst_77 = arith.constant dense<0.000000e+00> : vector<8x8xf32>
    %229 = tpu.matmul %228, %219, %cst_77 {dimension_numbers = #tpu.dot_dimension_numbers<[1], [0], [0], [1], [0, 0, 1, 1], [], []>} : vector<8x8xbf16>, vector<8x8xbf16>, vector<8x8xf32> -> vector<8x8xf32>
    %230 = vector.extract_strided_slice %211 {offsets = [0, 8], sizes = [8, 8], strides = [1, 1]} : vector<8x32xf32> to vector<8x8xf32>
    %231 = arith.truncf %230 : vector<8x8xf32> to vector<8x8xbf16>
    %232 = vector.extract_strided_slice %212 {offsets = [0, 8], sizes = [8, 8], strides = [1, 1]} : vector<8x32xf32> to vector<8x8xf32>
    %233 = arith.truncf %232 : vector<8x8xf32> to vector<8x8xbf16>
    %234 = vector.extract_strided_slice %213 {offsets = [0, 8], sizes = [8, 8], strides = [1, 1]} : vector<8x32xf32> to vector<8x8xf32>
    %235 = arith.truncf %234 : vector<8x8xf32> to vector<8x8xbf16>
    "tpu.trace_start"() <{level = 10 : i32, message = "qd,kd->qk"}> : () -> ()
    %cst_78 = arith.constant dense<0.000000e+00> : vector<8x8xf32>
    %236 = tpu.matmul %231, %233, %cst_78 {dimension_numbers = #tpu.dot_dimension_numbers<[1], [1], [0], [0], [0, 0, 1, 0], [], []>} : vector<8x8xbf16>, vector<8x8xbf16>, vector<8x8xf32> -> vector<8x8xf32>
    "tpu.trace_stop"() : () -> ()
    %237 = vector.broadcast %11 : vector<1x8xf32> to vector<8x8xf32>
    %238 = arith.addf %236, %237 : vector<8x8xf32>
    %239 = math.exp %238 : vector<8x8xf32>
    %cst_79 = arith.constant dense<0.000000e+00> : vector<8xf32>
    %240 = vector.multi_reduction <add>, %239, %cst_79 [1] : vector<8x8xf32> to vector<8xf32>
    %241 = vector.shape_cast %240 : vector<8xf32> to vector<8x1xf32>
    %242 = vector.broadcast %241 : vector<8x1xf32> to vector<8x8xf32>
    %243 = arith.divf %239, %242 : vector<8x8xf32>
    %244 = arith.truncf %243 : vector<8x8xf32> to vector<8x8xbf16>
    %cst_80 = arith.constant dense<0.000000e+00> : vector<8x8xf32>
    %245 = tpu.matmul %244, %235, %cst_80 {dimension_numbers = #tpu.dot_dimension_numbers<[1], [0], [0], [1], [0, 0, 1, 1], [], []>} : vector<8x8xbf16>, vector<8x8xbf16>, vector<8x8xf32> -> vector<8x8xf32>
    %246 = vector.extract_strided_slice %211 {offsets = [0, 16], sizes = [8, 8], strides = [1, 1]} : vector<8x32xf32> to vector<8x8xf32>
    %247 = arith.truncf %246 : vector<8x8xf32> to vector<8x8xbf16>
    %248 = vector.extract_strided_slice %212 {offsets = [0, 16], sizes = [8, 8], strides = [1, 1]} : vector<8x32xf32> to vector<8x8xf32>
    %249 = arith.truncf %248 : vector<8x8xf32> to vector<8x8xbf16>
    %250 = vector.extract_strided_slice %213 {offsets = [0, 16], sizes = [8, 8], strides = [1, 1]} : vector<8x32xf32> to vector<8x8xf32>
    %251 = arith.truncf %250 : vector<8x8xf32> to vector<8x8xbf16>
    "tpu.trace_start"() <{level = 10 : i32, message = "qd,kd->qk"}> : () -> ()
    %cst_81 = arith.constant dense<0.000000e+00> : vector<8x8xf32>
    %252 = tpu.matmul %247, %249, %cst_81 {dimension_numbers = #tpu.dot_dimension_numbers<[1], [1], [0], [0], [0, 0, 1, 0], [], []>} : vector<8x8xbf16>, vector<8x8xbf16>, vector<8x8xf32> -> vector<8x8xf32>
    "tpu.trace_stop"() : () -> ()
    %253 = vector.broadcast %11 : vector<1x8xf32> to vector<8x8xf32>
    %254 = arith.addf %252, %253 : vector<8x8xf32>
    %255 = math.exp %254 : vector<8x8xf32>
    %cst_82 = arith.constant dense<0.000000e+00> : vector<8xf32>
    %256 = vector.multi_reduction <add>, %255, %cst_82 [1] : vector<8x8xf32> to vector<8xf32>
    %257 = vector.shape_cast %256 : vector<8xf32> to vector<8x1xf32>
    %258 = vector.broadcast %257 : vector<8x1xf32> to vector<8x8xf32>
    %259 = arith.divf %255, %258 : vector<8x8xf32>
    %260 = arith.truncf %259 : vector<8x8xf32> to vector<8x8xbf16>
    %cst_83 = arith.constant dense<0.000000e+00> : vector<8x8xf32>
    %261 = tpu.matmul %260, %251, %cst_83 {dimension_numbers = #tpu.dot_dimension_numbers<[1], [0], [0], [1], [0, 0, 1, 1], [], []>} : vector<8x8xbf16>, vector<8x8xbf16>, vector<8x8xf32> -> vector<8x8xf32>
    %262 = vector.extract_strided_slice %211 {offsets = [0, 24], sizes = [8, 8], strides = [1, 1]} : vector<8x32xf32> to vector<8x8xf32>
    %263 = arith.truncf %262 : vector<8x8xf32> to vector<8x8xbf16>
    %264 = vector.extract_strided_slice %212 {offsets = [0, 24], sizes = [8, 8], strides = [1, 1]} : vector<8x32xf32> to vector<8x8xf32>
    %265 = arith.truncf %264 : vector<8x8xf32> to vector<8x8xbf16>
    %266 = vector.extract_strided_slice %213 {offsets = [0, 24], sizes = [8, 8], strides = [1, 1]} : vector<8x32xf32> to vector<8x8xf32>
    %267 = arith.truncf %266 : vector<8x8xf32> to vector<8x8xbf16>
    "tpu.trace_start"() <{level = 10 : i32, message = "qd,kd->qk"}> : () -> ()
    %cst_84 = arith.constant dense<0.000000e+00> : vector<8x8xf32>
    %268 = tpu.matmul %263, %265, %cst_84 {dimension_numbers = #tpu.dot_dimension_numbers<[1], [1], [0], [0], [0, 0, 1, 0], [], []>} : vector<8x8xbf16>, vector<8x8xbf16>, vector<8x8xf32> -> vector<8x8xf32>
    "tpu.trace_stop"() : () -> ()
    %269 = vector.broadcast %11 : vector<1x8xf32> to vector<8x8xf32>
    %270 = arith.addf %268, %269 : vector<8x8xf32>
    %271 = math.exp %270 : vector<8x8xf32>
    %cst_85 = arith.constant dense<0.000000e+00> : vector<8xf32>
    %272 = vector.multi_reduction <add>, %271, %cst_85 [1] : vector<8x8xf32> to vector<8xf32>
    %273 = vector.shape_cast %272 : vector<8xf32> to vector<8x1xf32>
    %274 = vector.broadcast %273 : vector<8x1xf32> to vector<8x8xf32>
    %275 = arith.divf %271, %274 : vector<8x8xf32>
    %276 = arith.truncf %275 : vector<8x8xf32> to vector<8x8xbf16>
    %cst_86 = arith.constant dense<0.000000e+00> : vector<8x8xf32>
    %277 = tpu.matmul %276, %267, %cst_86 {dimension_numbers = #tpu.dot_dimension_numbers<[1], [0], [0], [1], [0, 0, 1, 1], [], []>} : vector<8x8xbf16>, vector<8x8xbf16>, vector<8x8xf32> -> vector<8x8xf32>
    %278 = tpu.concatenate %229, %245, %261, %277 in 1 : vector<8x8xf32>, vector<8x8xf32>, vector<8x8xf32>, vector<8x8xf32> -> vector<8x32xf32>
    %279 = arith.truncf %278 : vector<8x32xf32> to vector<8x32xbf16>
    %c1_87 = arith.constant 1 : index
    %c0_88 = arith.constant 0 : index
    %c0_89 = arith.constant 0 : index
    %280 = vector.load %arg5[%c1_87, %c0_88, %c0_89] : memref<2x32x32xbf16, #tpu.memory_space<vmem>>, vector<1x32x32xbf16>
    %281 = vector.shape_cast %280 : vector<1x32x32xbf16> to vector<32x32xbf16>
    %cst_90 = arith.constant dense<0.000000e+00> : vector<8x32xf32>
    %282 = tpu.matmul %279, %281, %cst_90 {dimension_numbers = #tpu.dot_dimension_numbers<[1], [0], [0], [1], [0, 0, 1, 1], [], []>} : vector<8x32xbf16>, vector<32x32xbf16>, vector<8x32xf32> -> vector<8x32xf32>
    %283 = vector.broadcast %177 : vector<1x32xf32> to vector<8x32xf32>
    %284 = arith.addf %282, %283 : vector<8x32xf32>
    %285 = arith.addf %172, %284 : vector<8x32xf32>
    %cst_91 = arith.constant dense<0.000000e+00> : vector<8xf32>
    %286 = vector.multi_reduction <add>, %285, %cst_91 [1] : vector<8x32xf32> to vector<8xf32>
    %287 = vector.shape_cast %286 : vector<8xf32> to vector<8x1xf32>
    %cst_92 = arith.constant 3.200000e+01 : f32
    %288 = vector.broadcast %cst_92 : f32 to vector<8x1xf32>
    %289 = arith.divf %287, %288 : vector<8x1xf32>
    %290 = vector.broadcast %289 : vector<8x1xf32> to vector<8x32xf32>
    %291 = arith.subf %285, %290 : vector<8x32xf32>
    %292 = arith.mulf %291, %291 : vector<8x32xf32>
    %cst_93 = arith.constant dense<0.000000e+00> : vector<8xf32>
    %293 = vector.multi_reduction <add>, %292, %cst_93 [1] : vector<8x32xf32> to vector<8xf32>
    %294 = vector.shape_cast %293 : vector<8xf32> to vector<8x1xf32>
    %cst_94 = arith.constant 3.200000e+01 : f32
    %295 = vector.broadcast %cst_94 : f32 to vector<8x1xf32>
    %296 = arith.divf %294, %295 : vector<8x1xf32>
    %cst_95 = arith.constant 9.99999997E-7 : f32
    %297 = vector.broadcast %cst_95 : f32 to vector<8x1xf32>
    %298 = arith.addf %296, %297 : vector<8x1xf32>
    %299 = math.rsqrt %298 : vector<8x1xf32>
    %300 = vector.broadcast %299 : vector<8x1xf32> to vector<8x32xf32>
    %301 = arith.mulf %291, %300 : vector<8x32xf32>
    %302 = vector.broadcast %178 : vector<1x32xf32> to vector<8x32xf32>
    %303 = arith.mulf %301, %302 : vector<8x32xf32>
    %304 = vector.broadcast %179 : vector<1x32xf32> to vector<8x32xf32>
    %305 = arith.addf %303, %304 : vector<8x32xf32>
    %306 = arith.truncf %305 : vector<8x32xf32> to vector<8x32xbf16>
    %c1_96 = arith.constant 1 : index
    %c0_97 = arith.constant 0 : index
    %c0_98 = arith.constant 0 : index
    %307 = vector.load %arg6[%c1_96, %c0_97, %c0_98] : memref<2x32x128xbf16, #tpu.memory_space<vmem>>, vector<1x32x128xbf16>
    %308 = vector.shape_cast %307 : vector<1x32x128xbf16> to vector<32x128xbf16>
    %cst_99 = arith.constant dense<0.000000e+00> : vector<8x128xf32>
    %309 = tpu.matmul %306, %308, %cst_99 {dimension_numbers = #tpu.dot_dimension_numbers<[1], [0], [0], [1], [0, 0, 1, 1], [], []>} : vector<8x32xbf16>, vector<32x128xbf16>, vector<8x128xf32> -> vector<8x128xf32>
    %c1_100 = arith.constant 1 : index
    %c0_101 = arith.constant 0 : index
    %c0_102 = arith.constant 0 : index
    %310 = vector.load %arg9[%c1_100, %c0_101, %c0_102] : memref<2x1x128xf32, #tpu.memory_space<vmem>>, vector<1x1x128xf32>
    %311 = vector.shape_cast %310 : vector<1x1x128xf32> to vector<1x128xf32>
    %312 = vector.broadcast %311 : vector<1x128xf32> to vector<8x128xf32>
    %313 = arith.addf %309, %312 : vector<8x128xf32>
    %314 = arith.mulf %313, %313 : vector<8x128xf32>
    %315 = arith.mulf %313, %314 : vector<8x128xf32>
    %cst_103 = arith.constant 4.471500e-02 : f32
    %316 = vector.broadcast %cst_103 : f32 to vector<8x128xf32>
    %317 = arith.mulf %316, %315 : vector<8x128xf32>
    %318 = arith.addf %313, %317 : vector<8x128xf32>
    %cst_104 = arith.constant 0.797884583 : f32
    %319 = vector.broadcast %cst_104 : f32 to vector<8x128xf32>
    %320 = arith.mulf %319, %318 : vector<8x128xf32>
    %321 = math.tanh %320 : vector<8x128xf32>
    %cst_105 = arith.constant 1.000000e+00 : f32
    %322 = vector.broadcast %cst_105 : f32 to vector<8x128xf32>
    %323 = arith.addf %322, %321 : vector<8x128xf32>
    %cst_106 = arith.constant 5.000000e-01 : f32
    %324 = vector.broadcast %cst_106 : f32 to vector<8x128xf32>
    %325 = arith.mulf %324, %323 : vector<8x128xf32>
    %326 = arith.mulf %313, %325 : vector<8x128xf32>
    %327 = arith.truncf %326 : vector<8x128xf32> to vector<8x128xbf16>
    %c1_107 = arith.constant 1 : index
    %c0_108 = arith.constant 0 : index
    %c0_109 = arith.constant 0 : index
    %328 = vector.load %arg7[%c1_107, %c0_108, %c0_109] : memref<2x128x32xbf16, #tpu.memory_space<vmem>>, vector<1x128x32xbf16>
    %329 = vector.shape_cast %328 : vector<1x128x32xbf16> to vector<128x32xbf16>
    %cst_110 = arith.constant dense<0.000000e+00> : vector<8x32xf32>
    %330 = tpu.matmul %327, %329, %cst_110 {dimension_numbers = #tpu.dot_dimension_numbers<[1], [0], [0], [1], [0, 0, 1, 1], [], []>} : vector<8x128xbf16>, vector<128x32xbf16>, vector<8x32xf32> -> vector<8x32xf32>
    %331 = vector.broadcast %180 : vector<1x32xf32> to vector<8x32xf32>
    %332 = arith.addf %330, %331 : vector<8x32xf32>
    %333 = arith.addf %285, %332 : vector<8x32xf32>
    %334 = vector.extract_strided_slice %333 {offsets = [0, 0], sizes = [1, 32], strides = [1, 1]} : vector<8x32xf32> to vector<1x32xf32>
    %c0_111 = arith.constant 0 : index
    %c0_112 = arith.constant 0 : index
    %335 = vector.load %arg11[%c0_111, %c0_112] : memref<2x32xf32, #tpu.memory_space<vmem>>, vector<1x32xf32>
    %c1_113 = arith.constant 1 : index
    %c0_114 = arith.constant 0 : index
    %336 = vector.load %arg11[%c1_113, %c0_114] : memref<2x32xf32, #tpu.memory_space<vmem>>, vector<1x32xf32>
    %cst_115 = arith.constant dense<0.000000e+00> : vector<1xf32>
    %337 = vector.multi_reduction <add>, %334, %cst_115 [1] : vector<1x32xf32> to vector<1xf32>
    %338 = vector.shape_cast %337 : vector<1xf32> to vector<1x1xf32>
    %cst_116 = arith.constant 3.200000e+01 : f32
    %339 = vector.broadcast %cst_116 : f32 to vector<1x1xf32>
    %340 = arith.divf %338, %339 : vector<1x1xf32>
    %341 = vector.broadcast %340 : vector<1x1xf32> to vector<1x32xf32>
    %342 = arith.subf %334, %341 : vector<1x32xf32>
    %343 = arith.mulf %342, %342 : vector<1x32xf32>
    %cst_117 = arith.constant dense<0.000000e+00> : vector<1xf32>
    %344 = vector.multi_reduction <add>, %343, %cst_117 [1] : vector<1x32xf32> to vector<1xf32>
    %345 = vector.shape_cast %344 : vector<1xf32> to vector<1x1xf32>
    %cst_118 = arith.constant 3.200000e+01 : f32
    %346 = vector.broadcast %cst_118 : f32 to vector<1x1xf32>
    %347 = arith.divf %345, %346 : vector<1x1xf32>
    %cst_119 = arith.constant 9.99999997E-7 : f32
    %348 = vector.broadcast %cst_119 : f32 to vector<1x1xf32>
    %349 = arith.addf %347, %348 : vector<1x1xf32>
    %350 = math.rsqrt %349 : vector<1x1xf32>
    %351 = vector.broadcast %350 : vector<1x1xf32> to vector<1x32xf32>
    %352 = arith.mulf %342, %351 : vector<1x32xf32>
    %353 = arith.mulf %352, %335 : vector<1x32xf32>
    %354 = arith.addf %353, %336 : vector<1x32xf32>
    %c0_120 = arith.constant 0 : index
    %c0_121 = arith.constant 0 : index
    %c0_122 = arith.constant 0 : index
    %355 = vector.load %arg12[%c0_120, %c0_121, %c0_122] : memref<1x1x32xf32, #tpu.memory_space<vmem>>, vector<1x1x32xf32>
    %356 = vector.shape_cast %355 : vector<1x1x32xf32> to vector<1x32xf32>
    %357 = vector.shape_cast %354 : vector<1x32xf32> to vector<1x1x32xf32>
    tpu.vector_store %arg12[%c0_120, %c0_121, %c0_122], %357 {strides = array<i32>} : memref<1x1x32xf32, #tpu.memory_space<vmem>>, vector<1x1x32xf32>,
    return
  }
  func.func @transform_0(%arg0: i32) -> (i32, i32, i32) {
    %c0_i32 = arith.constant 0 : i32
    %c0_i32_0 = arith.constant 0 : i32
    %c0_i32_1 = arith.constant 0 : i32
    return %arg0, %c0_i32, %c0_i32_0 : i32, i32, i32
  }
  func.func @transform_1(%arg0: i32) -> (i32, i32) {
    %c0_i32 = arith.constant 0 : i32
    %c0_i32_0 = arith.constant 0 : i32
    %c0_i32_1 = arith.constant 0 : i32
    return %c0_i32, %c0_i32_0 : i32, i32
  }
  func.func @transform_2(%arg0: i32) -> (i32, i32) {
    %c0_i32 = arith.constant 0 : i32
    %c0_i32_0 = arith.constant 0 : i32
    %c0_i32_1 = arith.constant 0 : i32
    return %c0_i32, %c0_i32_0 : i32, i32
  }
  func.func @transform_3(%arg0: i32) -> (i32, i32, i32) {
    %c0_i32 = arith.constant 0 : i32
    %c0_i32_0 = arith.constant 0 : i32
    %c0_i32_1 = arith.constant 0 : i32
    %c0_i32_2 = arith.constant 0 : i32
    return %c0_i32, %c0_i32_0, %c0_i32_1 : i32, i32, i32
  }
  func.func @transform_4(%arg0: i32) -> (i32, i32, i32) {
    %c0_i32 = arith.constant 0 : i32
    %c0_i32_0 = arith.constant 0 : i32
    %c0_i32_1 = arith.constant 0 : i32
    %c0_i32_2 = arith.constant 0 : i32
    return %c0_i32, %c0_i32_0, %c0_i32_1 : i32, i32, i32
  }
  func.func @transform_5(%arg0: i32) -> (i32, i32, i32) {
    %c0_i32 = arith.constant 0 : i32
    %c0_i32_0 = arith.constant 0 : i32
    %c0_i32_1 = arith.constant 0 : i32
    %c0_i32_2 = arith.constant 0 : i32
    return %c0_i32, %c0_i32_0, %c0_i32_1 : i32, i32, i32
  }
  func.func @transform_6(%arg0: i32) -> (i32, i32, i32) {
    %c0_i32 = arith.constant 0 : i32
    %c0_i32_0 = arith.constant 0 : i32
    %c0_i32_1 = arith.constant 0 : i32
    %c0_i32_2 = arith.constant 0 : i32
    return %c0_i32, %c0_i32_0, %c0_i32_1 : i32, i32, i32
  }
  func.func @transform_7(%arg0: i32) -> (i32, i32, i32) {
    %c0_i32 = arith.constant 0 : i32
    %c0_i32_0 = arith.constant 0 : i32
    %c0_i32_1 = arith.constant 0 : i32
    %c0_i32_2 = arith.constant 0 : i32
    return %c0_i32, %c0_i32_0, %c0_i32_1 : i32, i32, i32
  }
  func.func @transform_8(%arg0: i32) -> (i32, i32, i32) {
    %c0_i32 = arith.constant 0 : i32
    %c0_i32_0 = arith.constant 0 : i32
    %c0_i32_1 = arith.constant 0 : i32
    %c0_i32_2 = arith.constant 0 : i32
    return %c0_i32, %c0_i32_0, %c0_i32_1 : i32, i32, i32
  }
  func.func @transform_9(%arg0: i32) -> (i32, i32, i32) {
    %c0_i32 = arith.constant 0 : i32
    %c0_i32_0 = arith.constant 0 : i32
    %c0_i32_1 = arith.constant 0 : i32
    %c0_i32_2 = arith.constant 0 : i32
    return %c0_i32, %c0_i32_0, %c0_i32_1 : i32, i32, i32
  }
  func.func @transform_10(%arg0: i32) -> (i32, i32) {
    %c0_i32 = arith.constant 0 : i32
    %c0_i32_0 = arith.constant 0 : i32
    %c0_i32_1 = arith.constant 0 : i32
    return %c0_i32, %c0_i32_0 : i32, i32
  }
  func.func @transform_11(%arg0: i32) -> (i32, i32, i32) {
    %c0_i32 = arith.constant 0 : i32
    %c0_i32_0 = arith.constant 0 : i32
    %c0_i32_1 = arith.constant 0 : i32
    return %arg0, %c0_i32, %c0_i32_0 : i32, i32, i32
  }
}

</mosaic_0001>

<llo_original>
// kernel: vision_encoder_forward.1
$region0: #{vision_encoder_forward.1}
  #allocation0 [shape = 'u32[]', space=smem, size = 0x4, offset = 0x4, fixed_abs, tag = 'smem constant byte address 0x4 - core index']
  #allocation1 [shape = 'u32[144,128]{1,0:T(1,128)}', space=vmem, size = 0x12000, scoped, tag = 'internal scratch']
  %s0 = inlined_call_operand.vmem [shape: bf16[2,8,192], index: 0, kind: input, shape index: {}]
  %s1 = inlined_call_operand.vmem [shape: f32[8,32], index: 1, kind: input, shape index: {}]
  %s2 = inlined_call_operand.vmem [shape: bf16[192,32], index: 2, kind: input, shape index: {}]
  %s3 = inlined_call_operand.vmem [shape: bf16[2,32,96], index: 3, kind: input, shape index: {}]
  %s4 = inlined_call_operand.vmem [shape: bf16[2,32,32], index: 4, kind: input, shape index: {}]
  %s5 = inlined_call_operand.vmem [shape: bf16[2,32,128], index: 5, kind: input, shape index: {}]
  %s6 = inlined_call_operand.vmem [shape: bf16[2,128,32], index: 6, kind: input, shape index: {}]
  %s7 = inlined_call_operand.vmem [shape: f32[2,1,96], index: 7, kind: input, shape index: {}]
  %s8 = inlined_call_operand.vmem [shape: f32[2,1,128], index: 8, kind: input, shape index: {}]
  %s9 = inlined_call_operand.vmem [shape: f32[2,6,32], index: 9, kind: input, shape index: {}]
  %s10 = inlined_call_operand.vmem [shape: f32[2,32], index: 10, kind: input, shape index: {}]
  %s11 = inlined_call_operand.hbm [shape: f32[2,1,32], index: 11, kind: output, shape index: {}]
  %s12 = sld [smem:[#allocation0]]
  $region77: #{vision_encoder_forward.1} parent=0
    _
  %s14 = ssub.s32 1, %s12
  %s15 = scalar_select 0, %s14, %s12
  $region1: #{vision_encoder_forward.1} parent=0
    #allocation2 [shape = 'u8[1024]{0}', space=vmem, size = 0x400, scoped, tag = 'output window, operand 0']
    #allocation3 [shape = 's32[2]{0}', space=sflag, size = 0x8, scoped, tag = 'scoped memory for vision_encoder_forward.1']
    %16 = vsyncpa [#allocation3], 0
    %s17 = scalar_lea.sflag [#allocation3], 1
    %18 = vsyncpa %s17, 0
    loop: start=0, step=1, limit=4
    $region2: #{vision_encoder_forward.1} parent=1 // loop_pre_header
      _
    $region3: #{vision_encoder_forward.1} parent=1 // loop_header
      %s20 = sphi 0, %s24
      %p21 = scmp.ge.s32.totalorder %s20, 4
      %s30 = sphi 0, %s32
      %s33 = sphi 0, %s30
      %s34 = sphi 0, %s33
      %s50 = sphi 0, %s34
      %s54 = sphi 0, %s54
      %s56 = sphi 0, %s54
      %s57 = sphi 0, %s56
      %s71 = sphi 0, %s57
      %s75 = sphi 0, %s75
      %s77 = sphi 0, %s75
      %s78 = sphi 0, %s77
      %s92 = sphi 0, %s78
      %s96 = sphi 0, %s96
      %s98 = sphi 0, %s96
      %s99 = sphi 0, %s98
      %s113 = sphi 0, %s99
      %s117 = sphi 0, %s117
      %s119 = sphi 0, %s117
      %s120 = sphi 0, %s119
      %s134 = sphi 0, %s120
      %s138 = sphi 0, %s138
      %s140 = sphi 0, %s138
      %s141 = sphi 0, %s140
      %s155 = sphi 0, %s141
      %s159 = sphi 0, %s159
      %s161 = sphi 0, %s159
      %s162 = sphi 0, %s161
      %s176 = sphi 0, %s162
      %s180 = sphi 0, %s180
      %s182 = sphi 0, %s180
      %s183 = sphi 0, %s182
      %s197 = sphi 0, %s183
      %s201 = sphi 0, %s201
      %s203 = sphi 0, %s201
      %s204 = sphi 0, %s203
      %s218 = sphi 0, %s204
      %s222 = sphi 0, %s222
      %s224 = sphi 0, %s222
      %s225 = sphi 0, %s224
      %s239 = sphi 0, %s225
      %s243 = sphi 0, %s243
      %s245 = sphi 0, %s243
      %s246 = sphi 0, %s245
      %s260 = sphi 0, %s246
      %s266 = sphi 0, %s268
      %s269 = sphi 0, %s266
      %s270 = sphi 0, %s269
      %s286 = sphi 0, %s270
    $region4: #{vision_encoder_forward.1} parent=1 // loop_header_branch
      %23 = sbr.rel (%p21) target = $region8
    $region5: #{vision_encoder_forward.1} parent=1 // loop_body
      %s25 = ssub.s32 %s20, 1
      %s26 = ssub.s32 %s20, 2
      %s27 = sadd.s32 %s20, 1
      %s28 = ssub.s32 %s20, %s27
      %p29 = scmp.eq.s32.totalorder %s28, 0
      %s31 = sadd.s32 %s30, 1
      %s32 = scalar_select %p29, %s30, %s31
      %p35 = pneg %p29
      %p36 = scmp.eq.s32.totalorder %s20, 1
      %p37 = por %p35, %p36
      %p38 = scmp.ne.s32.totalorder %s30, %s33
      %p39 = scmp.eq.s32.totalorder %s20, 0
      %p40 = por %p38, %p39
      %p41 = scmp.ne.s32.totalorder %s30, %s33
      %p42 = scmp.eq.s32.totalorder %s25, 1
      %p43 = por %p41, %p42
      %p44 = scmp.ne.s32.totalorder %s33, %s34
      %p45 = scmp.eq.s32.totalorder %s25, 0
      %p46 = por %p44, %p45
      %p47 = scmp.ne.s32.totalorder %s33, %s34
      %p48 = scmp.eq.s32.totalorder %s26, 1
      %p49 = por %p47, %p48
      %p51 = scmp.ne.s32.totalorder %s34, %s50
      %p52 = scmp.eq.s32.totalorder %s26, 0
      %p53 = por %p51, %p52
      %s55 = sadd.s32 %s54, 1
      %p58 = scmp.eq.s32.totalorder %s20, 1
      %p59 = scmp.ne.s32.totalorder %s54, %s56
      %p60 = scmp.eq.s32.totalorder %s20, 0
      %p61 = por %p59, %p60
      %p62 = scmp.ne.s32.totalorder %s54, %s56
      %p63 = scmp.eq.s32.totalorder %s25, 1
      %p64 = por %p62, %p63
      %p65 = scmp.ne.s32.totalorder %s56, %s57
      %p66 = scmp.eq.s32.totalorder %s25, 0
      %p67 = por %p65, %p66
      %p68 = scmp.ne.s32.totalorder %s56, %s57
      %p69 = scmp.eq.s32.totalorder %s26, 1
      %p70 = por %p68, %p69
      %p72 = scmp.ne.s32.totalorder %s57, %s71
      %p73 = scmp.eq.s32.totalorder %s26, 0
      %p74 = por %p72, %p73
      %s76 = sadd.s32 %s75, 1
      %p79 = scmp.eq.s32.totalorder %s20, 1
      %p80 = scmp.ne.s32.totalorder %s75, %s77
      %p81 = scmp.eq.s32.totalorder %s20, 0
      %p82 = por %p80, %p81
      %p83 = scmp.ne.s32.totalorder %s75, %s77
      %p84 = scmp.eq.s32.totalorder %s25, 1
      %p85 = por %p83, %p84
      %p86 = scmp.ne.s32.totalorder %s77, %s78
      %p87 = scmp.eq.s32.totalorder %s25, 0
      %p88 = por %p86, %p87
      %p89 = scmp.ne.s32.totalorder %s77, %s78
      %p90 = scmp.eq.s32.totalorder %s26, 1
      %p91 = por %p89, %p90
      %p93 = scmp.ne.s32.totalorder %s78, %s92
      %p94 = scmp.eq.s32.totalorder %s26, 0
      %p95 = por %p93, %p94
      %s97 = sadd.s32 %s96, 1
      %p100 = scmp.eq.s32.totalorder %s20, 1
      %p101 = scmp.ne.s32.totalorder %s96, %s98
      %p102 = scmp.eq.s32.totalorder %s20, 0
      %p103 = por %p101, %p102
      %p104 = scmp.ne.s32.totalorder %s96, %s98
      %p105 = scmp.eq.s32.totalorder %s25, 1
      %p106 = por %p104, %p105
      %p107 = scmp.ne.s32.totalorder %s98, %s99
      %p108 = scmp.eq.s32.totalorder %s25, 0
      %p109 = por %p107, %p108
      %p110 = scmp.ne.s32.totalorder %s98, %s99
      %p111 = scmp.eq.s32.totalorder %s26, 1
      %p112 = por %p110, %p111
      %p114 = scmp.ne.s32.totalorder %s99, %s113
      %p115 = scmp.eq.s32.totalorder %s26, 0
      %p116 = por %p114, %p115
      %s118 = sadd.s32 %s117, 1
      %p121 = scmp.eq.s32.totalorder %s20, 1
      %p122 = scmp.ne.s32.totalorder %s117, %s119
      %p123 = scmp.eq.s32.totalorder %s20, 0
      %p124 = por %p122, %p123
      %p125 = scmp.ne.s32.totalorder %s117, %s119
      %p126 = scmp.eq.s32.totalorder %s25, 1
      %p127 = por %p125, %p126
      %p128 = scmp.ne.s32.totalorder %s119, %s120
      %p129 = scmp.eq.s32.totalorder %s25, 0
      %p130 = por %p128, %p129
      %p131 = scmp.ne.s32.totalorder %s119, %s120
      %p132 = scmp.eq.s32.totalorder %s26, 1
      %p133 = por %p131, %p132
      %p135 = scmp.ne.s32.totalorder %s120, %s134
      %p136 = scmp.eq.s32.totalorder %s26, 0
      %p137 = por %p135, %p136
      %s139 = sadd.s32 %s138, 1
      %p142 = scmp.eq.s32.totalorder %s20, 1
      %p143 = scmp.ne.s32.totalorder %s138, %s140
      %p144 = scmp.eq.s32.totalorder %s20, 0
      %p145 = por %p143, %p144
      %p146 = scmp.ne.s32.totalorder %s138, %s140
      %p147 = scmp.eq.s32.totalorder %s25, 1
      %p148 = por %p146, %p147
      %p149 = scmp.ne.s32.totalorder %s140, %s141
      %p150 = scmp.eq.s32.totalorder %s25, 0
      %p151 = por %p149, %p150
      %p152 = scmp.ne.s32.totalorder %s140, %s141
      %p153 = scmp.eq.s32.totalorder %s26, 1
      %p154 = por %p152, %p153
      %p156 = scmp.ne.s32.totalorder %s141, %s155
      %p157 = scmp.eq.s32.totalorder %s26, 0
      %p158 = por %p156, %p157
      %s160 = sadd.s32 %s159, 1
      %p163 = scmp.eq.s32.totalorder %s20, 1
      %p164 = scmp.ne.s32.totalorder %s159, %s161
      %p165 = scmp.eq.s32.totalorder %s20, 0
      %p166 = por %p164, %p165
      %p167 = scmp.ne.s32.totalorder %s159, %s161
      %p168 = scmp.eq.s32.totalorder %s25, 1
      %p169 = por %p167, %p168
      %p170 = scmp.ne.s32.totalorder %s161, %s162
      %p171 = scmp.eq.s32.totalorder %s25, 0
      %p172 = por %p170, %p171
      %p173 = scmp.ne.s32.totalorder %s161, %s162
      %p174 = scmp.eq.s32.totalorder %s26, 1
      %p175 = por %p173, %p174
      %p177 = scmp.ne.s32.totalorder %s162, %s176
      %p178 = scmp.eq.s32.totalorder %s26, 0
      %p179 = por %p177, %p178
      %s181 = sadd.s32 %s180, 1
      %p184 = scmp.eq.s32.totalorder %s20, 1
      %p185 = scmp.ne.s32.totalorder %s180, %s182
      %p186 = scmp.eq.s32.totalorder %s20, 0
      %p187 = por %p185, %p186
      %p188 = scmp.ne.s32.totalorder %s180, %s182
      %p189 = scmp.eq.s32.totalorder %s25, 1
      %p190 = por %p188, %p189
      %p191 = scmp.ne.s32.totalorder %s182, %s183
      %p192 = scmp.eq.s32.totalorder %s25, 0
      %p193 = por %p191, %p192
      %p194 = scmp.ne.s32.totalorder %s182, %s183
      %p195 = scmp.eq.s32.totalorder %s26, 1
      %p196 = por %p194, %p195
      %p198 = scmp.ne.s32.totalorder %s183, %s197
      %p199 = scmp.eq.s32.totalorder %s26, 0
      %p200 = por %p198, %p199
      %s202 = sadd.s32 %s201, 1
      %p205 = scmp.eq.s32.totalorder %s20, 1
      %p206 = scmp.ne.s32.totalorder %s201, %s203
      %p207 = scmp.eq.s32.totalorder %s20, 0
      %p208 = por %p206, %p207
      %p209 = scmp.ne.s32.totalorder %s201, %s203
      %p210 = scmp.eq.s32.totalorder %s25, 1
      %p211 = por %p209, %p210
      %p212 = scmp.ne.s32.totalorder %s203, %s204
      %p213 = scmp.eq.s32.totalorder %s25, 0
      %p214 = por %p212, %p213
      %p215 = scmp.ne.s32.totalorder %s203, %s204
      %p216 = scmp.eq.s32.totalorder %s26, 1
      %p217 = por %p215, %p216
      %p219 = scmp.ne.s32.totalorder %s204, %s218
      %p220 = scmp.eq.s32.totalorder %s26, 0
      %p221 = por %p219, %p220
      %s223 = sadd.s32 %s222, 1
      %p226 = scmp.eq.s32.totalorder %s20, 1
      %p227 = scmp.ne.s32.totalorder %s222, %s224
      %p228 = scmp.eq.s32.totalorder %s20, 0
      %p229 = por %p227, %p228
      %p230 = scmp.ne.s32.totalorder %s222, %s224
      %p231 = scmp.eq.s32.totalorder %s25, 1
      %p232 = por %p230, %p231
      %p233 = scmp.ne.s32.totalorder %s224, %s225
      %p234 = scmp.eq.s32.totalorder %s25, 0
      %p235 = por %p233, %p234
      %p236 = scmp.ne.s32.totalorder %s224, %s225
      %p237 = scmp.eq.s32.totalorder %s26, 1
      %p238 = por %p236, %p237
      %p240 = scmp.ne.s32.totalorder %s225, %s239
      %p241 = scmp.eq.s32.totalorder %s26, 0
      %p242 = por %p240, %p241
      %s244 = sadd.s32 %s243, 1
      %p247 = scmp.eq.s32.totalorder %s20, 1
      %p248 = scmp.ne.s32.totalorder %s243, %s245
      %p249 = scmp.eq.s32.totalorder %s20, 0
      %p250 = por %p248, %p249
      %p251 = scmp.ne.s32.totalorder %s243, %s245
      %p252 = scmp.eq.s32.totalorder %s25, 1
      %p253 = por %p251, %p252
      %p254 = scmp.ne.s32.totalorder %s245, %s246
      %p255 = scmp.eq.s32.totalorder %s25, 0
      %p256 = por %p254, %p255
      %p257 = scmp.ne.s32.totalorder %s245, %s246
      %p258 = scmp.eq.s32.totalorder %s26, 1
      %p259 = por %p257, %p258
      %p261 = scmp.ne.s32.totalorder %s246, %s260
      %p262 = scmp.eq.s32.totalorder %s26, 0
      %p263 = por %p261, %p262
      %s264 = ssub.s32 %s20, %s27
      %p265 = scmp.eq.s32.totalorder %s264, 0
      %s267 = sadd.s32 %s266, 1
      %s268 = scalar_select %p265, %s266, %s267
      %p271 = pneg %p265
      %p272 = scmp.eq.s32.totalorder %s20, 1
      %p273 = por %p271, %p272
      %p274 = scmp.ne.s32.totalorder %s266, %s269
      %p275 = scmp.eq.s32.totalorder %s20, 0
      %p276 = por %p274, %p275
      %p277 = scmp.ne.s32.totalorder %s266, %s269
      %p278 = scmp.eq.s32.totalorder %s25, 1
      %p279 = por %p277, %p278
      %p280 = scmp.ne.s32.totalorder %s269, %s270
      %p281 = scmp.eq.s32.totalorder %s25, 0
      %p282 = por %p280, %p281
      %p283 = scmp.ne.s32.totalorder %s269, %s270
      %p284 = scmp.eq.s32.totalorder %s26, 1
      %p285 = por %p283, %p284
      %p287 = scmp.ne.s32.totalorder %s270, %s286
      %p288 = scmp.eq.s32.totalorder %s26, 0
      %p289 = por %p287, %p288
      %p290 = scmp.le.s32.totalorder 1, %s20
      %p291 = scmp.lt.s32.totalorder %s20, 3
      %p292 = pnand %p290, %p291
      %p293 = pneg %p292
      // Predicated region
      $region9: #{vision_encoder_forward.1} parent=5 // pred_check
        _
      $region10: #{vision_encoder_forward.1} parent=5 // pred_check_branch
        %295 = sbr.rel (%p292) target = $region12
      $region11: #{vision_encoder_forward.1} parent=5 // pred_region
        %s296 = ssub.s32 %s20, 1
        // Predicated region
        $region13: #{vision_encoder_forward.1} parent=11 // pred_check
          %p297 = pneg %p67
        $region14: #{vision_encoder_forward.1} parent=11 // pred_check_branch
          %299 = sbr.rel (%p297) target = $region16
        $region15: #{vision_encoder_forward.1} parent=11 // pred_region
          _
        $region16: #{vision_encoder_forward.1} parent=11 // pred_fallthru
          _
        // Predicated region
        $region17: #{vision_encoder_forward.1} parent=11 // pred_check
          %p300 = pneg %p88
        $region18: #{vision_encoder_forward.1} parent=11 // pred_check_branch
          %302 = sbr.rel (%p300) target = $region20
        $region19: #{vision_encoder_forward.1} parent=11 // pred_region
          _
        $region20: #{vision_encoder_forward.1} parent=11 // pred_fallthru
          _
        // Predicated region
        $region21: #{vision_encoder_forward.1} parent=11 // pred_check
          %p303 = pneg %p109
        $region22: #{vision_encoder_forward.1} parent=11 // pred_check_branch
          %305 = sbr.rel (%p303) target = $region24
        $region23: #{vision_encoder_forward.1} parent=11 // pred_region
          _
        $region24: #{vision_encoder_forward.1} parent=11 // pred_fallthru
          _
        // Predicated region
        $region25: #{vision_encoder_forward.1} parent=11 // pred_check
          %p306 = pneg %p130
        $region26: #{vision_encoder_forward.1} parent=11 // pred_check_branch
          %308 = sbr.rel (%p306) target = $region28
        $region27: #{vision_encoder_forward.1} parent=11 // pred_region
          _
        $region28: #{vision_encoder_forward.1} parent=11 // pred_fallthru
          _
        // Predicated region
        $region29: #{vision_encoder_forward.1} parent=11 // pred_check
          %p309 = pneg %p151
        $region30: #{vision_encoder_forward.1} parent=11 // pred_check_branch
          %311 = sbr.rel (%p309) target = $region32
        $region31: #{vision_encoder_forward.1} parent=11 // pred_region
          _
        $region32: #{vision_encoder_forward.1} parent=11 // pred_fallthru
          _
        // Predicated region
        $region33: #{vision_encoder_forward.1} parent=11 // pred_check
          %p312 = pneg %p172
        $region34: #{vision_encoder_forward.1} parent=11 // pred_check_branch
          %314 = sbr.rel (%p312) target = $region36
        $region35: #{vision_encoder_forward.1} parent=11 // pred_region
          _
        $region36: #{vision_encoder_forward.1} parent=11 // pred_fallthru
          _
        // Predicated region
        $region37: #{vision_encoder_forward.1} parent=11 // pred_check
          %p315 = pneg %p193
        $region38: #{vision_encoder_forward.1} parent=11 // pred_check_branch
          %317 = sbr.rel (%p315) target = $region40
        $region39: #{vision_encoder_forward.1} parent=11 // pred_region
          _
        $region40: #{vision_encoder_forward.1} parent=11 // pred_fallthru
          _
        // Predicated region
        $region41: #{vision_encoder_forward.1} parent=11 // pred_check
          %p318 = pneg %p214
        $region42: #{vision_encoder_forward.1} parent=11 // pred_check_branch
          %320 = sbr.rel (%p318) target = $region44
        $region43: #{vision_encoder_forward.1} parent=11 // pred_region
          _
        $region44: #{vision_encoder_forward.1} parent=11 // pred_fallthru
          _
        // Predicated region
        $region45: #{vision_encoder_forward.1} parent=11 // pred_check
          %p321 = pneg %p235
        $region46: #{vision_encoder_forward.1} parent=11 // pred_check_branch
          %323 = sbr.rel (%p321) target = $region48
        $region47: #{vision_encoder_forward.1} parent=11 // pred_region
          _
        $region48: #{vision_encoder_forward.1} parent=11 // pred_fallthru
          _
        // Predicated region
        $region49: #{vision_encoder_forward.1} parent=11 // pred_check
          %p324 = pneg %p256
        $region50: #{vision_encoder_forward.1} parent=11 // pred_check_branch
          %326 = sbr.rel (%p324) target = $region52
        $region51: #{vision_encoder_forward.1} parent=11 // pred_region
          _
        $region52: #{vision_encoder_forward.1} parent=11 // pred_fallthru
          _
      $region12: #{vision_encoder_forward.1} parent=5 // pred_fallthru
        _
      %p327 = scmp.lt.s32.totalorder %s20, 2
      // Predicated region
      $region53: #{vision_encoder_forward.1} parent=5 // pred_check
        %p328 = pneg %p327
      $region54: #{vision_encoder_forward.1} parent=5 // pred_check_branch
        %330 = sbr.rel (%p328) target = $region56
      $region55: #{vision_encoder_forward.1} parent=5 // pred_region
        // Predicated region
        $region57: #{vision_encoder_forward.1} parent=55 // pred_check
          %p331 = pneg %p40
        $region58: #{vision_encoder_forward.1} parent=55 // pred_check_branch
          %333 = sbr.rel (%p331) target = $region60
        $region59: #{vision_encoder_forward.1} parent=55 // pred_region
          %p334 = scmp.lt.s32.totalorder %s20, 1
          %s335 = scalar_select %p334, %s20, 1
          %s336 = smul.addr %s335, 2
          %s337 = smul.addr %s336, 4
          %s338 = scalar_lea.vmem %s0, %s337
        $region60: #{vision_encoder_forward.1} parent=55 // pred_fallthru
          _
      $region56: #{vision_encoder_forward.1} parent=5 // pred_fallthru
        _
      %p339 = scmp.le.s32.totalorder 1, %s20
      %p340 = scmp.lt.s32.totalorder %s20, 3
      %p341 = pnand %p339, %p340
      %p342 = pneg %p341
      // Predicated region
      $region61: #{vision_encoder_forward.1} parent=5 // pred_check
        _
      $region62: #{vision_encoder_forward.1} parent=5 // pred_check_branch
        %344 = sbr.rel (%p341) target = $region64
      $region63: #{vision_encoder_forward.1} parent=5 // pred_region
        %s345 = ssub.s32 %s20, 1
        %p346 = scmp.lt.s32.totalorder %s25, 1
        %s347 = scalar_select %p346, %s25, 1
        %s348 = smul.addr %s347, 2
        %s349 = smul.addr %s348, 4
        %s350 = scalar_lea.vmem %s0, %s349
        %p351 = pneg %p46
        %p352 = pneg %p43
        %p353 = pneg %p67
        %p354 = pneg %p64
        %p355 = pneg %p88
        %p356 = pneg %p85
        %p357 = pneg %p109
        %p358 = pneg %p106
        %p359 = pneg %p130
        %p360 = pneg %p127
        %p361 = pneg %p151
        %p362 = pneg %p148
        %p363 = pneg %p172
        %p364 = pneg %p169
        %p365 = pneg %p193
        %p366 = pneg %p190
        %p367 = pneg %p214
        %p368 = pneg %p211
        %p369 = pneg %p235
        %p370 = pneg %p232
        %p371 = pneg %p256
        %p372 = pneg %p253
        %p373 = pneg %p282
        %p374 = pneg %p279
        %s375 = sand.u32 %s269, 1
        %s376 = scalar_lea.sflag [#allocation3], %s375
        %s377 = sand.u32 %s269, 1
        %s378 = scalar_lea.vmem [#allocation2], %s377
        %p379 = scmp.lt.s32.totalorder %s25, 1
        %s380 = scalar_select %p379, %s25, 1
        %s381 = smul.addr %s380, 2
        %s382 = smul.addr %s381, 4
        %s383 = scalar_lea.vmem %s0, %s382
        %v385 = vld [vmem:[%s383] sm:$0xff]
        %v386 = vld [vmem:[%s2] sm:$0xf]
        %v387 = vld [vmem:[%s2 + $0x4] sm:$0xf]
        %v388 = vld [vmem:[%s2 + $0x8] sm:$0xf]
        %v389 = vld [vmem:[%s2 + $0xc] sm:$0xf]
        %v390 = vld [vmem:[%s2 + $0x10] sm:$0xf]
        %v391 = vld [vmem:[%s2 + $0x14] sm:$0xf]
        %v392 = vld [vmem:[%s2 + $0x18] sm:$0xf]
        %v393 = vld [vmem:[%s2 + $0x1c] sm:$0xf]
        %v394 = vld [vmem:[%s2 + $0x20] sm:$0xf]
        %v395 = vld [vmem:[%s2 + $0x24] sm:$0xf]
        %v396 = vld [vmem:[%s2 + $0x28] sm:$0xf]
        %v397 = vld [vmem:[%s2 + $0x2c] sm:$0xf]
        %v398 = vld [vmem:[%s2 + $0x30] sm:$0xf]
        %v399 = vld [vmem:[%s2 + $0x34] sm:$0xf]
        %v400 = vld [vmem:[%s2 + $0x38] sm:$0xf]
        %v401 = vld [vmem:[%s2 + $0x3c] sm:$0xf]
        %v402 = vld [vmem:[%s2 + $0x40] sm:$0xf]
        %v403 = vld [vmem:[%s2 + $0x44] sm:$0xf]
        %v404 = vld [vmem:[%s2 + $0x48] sm:$0xf]
        %v405 = vld [vmem:[%s2 + $0x4c] sm:$0xf]
        %v406 = vld [vmem:[%s2 + $0x50] sm:$0xf]
        %v407 = vld [vmem:[%s2 + $0x54] sm:$0xf]
        %v408 = vld [vmem:[%s2 + $0x58] sm:$0xf]
        %v409 = vld [vmem:[%s2 + $0x5c] sm:$0xf]
        %v410 = vld [vmem:[%s1] sm:$0xff]
        %v412 = vunpack.c.l.b16 %v385
        %v413 = vunpack.c.h.b16 %v385
        %v414 = vpack.c.b16 %v412, %v412
        %v415 = vpack.c.b16 %v413, %v413
        %v441 = vunpack.c.l.b16 %v386
        %v442 = vunpack.c.l.b16 %v387
        %v443 = vunpack.c.l.b16 %v388
        %v444 = vunpack.c.l.b16 %v389
        %v445 = vunpack.c.l.b16 %v390
        %v446 = vunpack.c.l.b16 %v391
        %v447 = vunpack.c.l.b16 %v392
        %v448 = vunpack.c.l.b16 %v393
        %v449 = vunpack.c.l.b16 %v394
        %v450 = vunpack.c.l.b16 %v395
        %v451 = vunpack.c.l.b16 %v396
        %v452 = vunpack.c.l.b16 %v397
        %v453 = vunpack.c.l.b16 %v398
        %v454 = vunpack.c.l.b16 %v399
        %v455 = vunpack.c.l.b16 %v400
        %v456 = vunpack.c.l.b16 %v401
        %v457 = vunpack.c.l.b16 %v402
        %v458 = vunpack.c.l.b16 %v403
        %v459 = vunpack.c.l.b16 %v404
        %v460 = vunpack.c.l.b16 %v405
        %v461 = vunpack.c.l.b16 %v406
        %v462 = vunpack.c.l.b16 %v407
        %v463 = vunpack.c.l.b16 %v408
        %v464 = vunpack.c.l.b16 %v409
        %v465 = vpack.c.b16 %v442, %v441
        %v466 = vpack.c.b16 %v444, %v443
        %v467 = vpack.c.b16 %v446, %v445
        %v468 = vpack.c.b16 %v448, %v447
        %v469 = vpack.c.b16 %v450, %v449
        %v470 = vpack.c.b16 %v452, %v451
        %v471 = vpack.c.b16 %v454, %v453
        %v472 = vpack.c.b16 %v456, %v455
        %v473 = vpack.c.b16 %v458, %v457
        %v474 = vpack.c.b16 %v460, %v459
        %v475 = vpack.c.b16 %v462, %v461
        %v476 = vpack.c.b16 %v464, %v463
        %vm489 = vcmask 523264
        %v491 = vsel %vm489, %v415, 0
        %493 = vmatprep.subr.bf16.mxu0 0
        %494 = vmatpush1.bf16.msra.mxu0 %v472
        %495 = vmatprep.subr.bf16.mxu0 0
        %496 = vmatpush1.bf16.msra.mxu0 %v471
        %497 = vmatprep.subr.bf16.mxu0 0
        %498 = vmatpush1.bf16.msra.mxu0 %v470
        %499 = vmatprep.subr.bf16.mxu0 0
        %500 = vmatpush1.bf16.msra.mxu0 %v469
        %501 = vmatprep.subr.bf16.mxu0 0
        %502 = vmatpush1.bf16.msra.mxu0 %v468
        %503 = vmatprep.subr.bf16.mxu0 0
        %504 = vmatpush1.bf16.msra.mxu0 %v467
        %505 = vmatprep.subr.bf16.mxu0 0
        %506 = vmatpush1.bf16.msra.mxu0 %v466
        %507 = vmatprep.subr.bf16.mxu0 0
        %508 = vmatpush1.bf16.msra.mxu0 %v465
        %509 = vmatprep.subr.bf16.mxu0 0
        %510 = vmatpush2.bf16.msra.mxu0 0
        %511 = vmatprep.subr.bf16.mxu0 0
        %512 = vmatpush2.bf16.msra.mxu0 0
        %513 = vmatprep.subr.bf16.mxu0 0
        %514 = vmatpush2.bf16.msra.mxu0 0
        %515 = vmatprep.subr.bf16.mxu0 0
        %516 = vmatpush2.bf16.msra.mxu0 0
        %517 = vmatprep.subr.bf16.mxu0 0
        %518 = vmatpush2.bf16.msra.mxu0 %v476
        %519 = vmatprep.subr.bf16.mxu0 0
        %520 = vmatpush2.bf16.msra.mxu0 %v475
        %521 = vmatprep.subr.bf16.mxu0 0
        %522 = vmatpush2.bf16.msra.mxu0 %v474
        %523 = vmatprep.subr.bf16.mxu0 0
        %524 = vmatpush2.bf16.msra.mxu0 %v473
        %525 = vmatprep.mubr.bf16.mxu0 %v491
        %526 = vmatmul.mubr.bf16.gmra.mxu0 %v414
        %v527 = vpop.f32.mrf.mxu0
        %v528 = vadd.f32 %v410, %v527
        %v529 = vpop.f32.mrf.mxu0
        %v530 = vpop.f32.mrf.mxu0
        %v531 = vpop.f32.mrf.mxu0
        %532 = vdwg.mxu0
        %v533 = vlaneseq
        %v534 = vand.u32 %v533, 127
        %vm535 = vcmp.lt.s32.totalorder %v534, 5
        %v536 = vsel %vm535, 0.0, -1e+30
        %v537 = vld [vmem:[%s9] sm:$0x3f]
        %vm538 = vcmask 261120
        %v539 = vsel %vm538, %v528, 0.0
        %540 = vadd.xlane.f32.xlu0 %v539
        %v541 = vpop.xlane.xlu0 %540
        %v542 = vrcp.pop 32.0
        %v543 = vmul.f32 %v541, %v542
        %v544 = vsub.f32 %v528, %v543
        %v545 = vmul.f32 %v544, %v544
        %v546 = vsel %vm538, %v545, 0.0
        %547 = vadd.xlane.f32.xlu0 %v546
        %v548 = vpop.xlane.xlu0 %547
        %v549 = vmul.f32 %v548, %v542
        %v550 = vadd.f32 %v549, 1e-06
        %v551 = vrsqrt.pop %v550
        %v552 = vmul.f32 %v544, %v551
        %v553 = vlaneseq
        %v554 = vshrl.u32 %v553, 7
        %v555 = vsub.s32 0, %v554
        %v556 = vrot.slane %v537, %v555
        %v557 = vmul.f32 %v552, %v556
        %v558 = vlaneseq
        %v559 = vshrl.u32 %v558, 7
        %v560 = vsub.s32 1, %v559
        %v561 = vrot.slane %v537, %v560
        %v562 = vadd.f32 %v557, %v561
        %v563 = vpack.c.bf16 %v562, %v562
        %v564 = vld [vmem:[%s3] sm:$0xf]
        %v565 = vld [vmem:[%s3 + $0x4] sm:$0xf]
        %v566 = vld [vmem:[%s3 + $0x8] sm:$0xf]
        %v567 = vld [vmem:[%s3 + $0xc] sm:$0xf]
        %v568 = vld [vmem:[%s7] sm:$0x1]
        %v570 = vlaneseq
        %v571 = vshrl.u32 %v570, 7
        %v572 = vsub.s32 0, %v571
        %v573 = vrot.slane %v568, %v572
        %v579 = vunpack.c.l.b16 %v564
        %v580 = vunpack.c.l.b16 %v565
        %v581 = vunpack.c.l.b16 %v566
        %v582 = vunpack.c.l.b16 %v567
        %v583 = vpack.c.b16 %v580, %v579
        %v584 = vpack.c.b16 %v582, %v581
        %v588 = vsel %vm538, %v563, 0
        %590 = vmatprep.subr.bf16.mxu0 0
        %591 = vmatpush1.bf16.msra.mxu0 0
        %592 = vmatprep.subr.bf16.mxu0 0
        %593 = vmatpush1.bf16.msra.mxu0 0
        %594 = vmatprep.subr.bf16.mxu0 0
        %595 = vmatpush1.bf16.msra.mxu0 0
        %596 = vmatprep.subr.bf16.mxu0 0
        %597 = vmatpush1.bf16.msra.mxu0 0
        %598 = vmatprep.subr.bf16.mxu0 0
        %599 = vmatpush1.bf16.msra.mxu0 0
        %600 = vmatprep.subr.bf16.mxu0 0
        %601 = vmatpush1.bf16.msra.mxu0 0
        %602 = vmatprep.subr.bf16.mxu0 0
        %603 = vmatpush1.bf16.msra.mxu0 %v584
        %604 = vmatprep.subr.bf16.mxu0 0
        %605 = vmatpush1.bf16.msra.mxu0 %v583
        %606 = vmatprep.subr.bf16.mxu0 0
        %607 = vmatpush2.bf16.msra.mxu0 0
        %608 = vmatprep.subr.bf16.mxu0 0
        %609 = vmatpush2.bf16.msra.mxu0 0
        %610 = vmatprep.subr.bf16.mxu0 0
        %611 = vmatpush2.bf16.msra.mxu0 0
        %612 = vmatprep.subr.bf16.mxu0 0
        %613 = vmatpush2.bf16.msra.mxu0 0
        %614 = vmatprep.subr.bf16.mxu0 0
        %615 = vmatpush2.bf16.msra.mxu0 0
        %616 = vmatprep.subr.bf16.mxu0 0
        %617 = vmatpush2.bf16.msra.mxu0 0
        %618 = vmatprep.subr.bf16.mxu0 0
        %619 = vmatpush2.bf16.msra.mxu0 0
        %620 = vmatprep.subr.bf16.mxu0 0
        %621 = vmatpush2.bf16.msra.mxu0 0
        %622 = vmatprep.mubr.bf16.mxu0 0
        %623 = vmatmul.mubr.bf16.gmra.mxu0 %v588
        %v624 = vpop.f32.mrf.mxu0
        %v625 = vadd.f32 %v573, %v624
        %v626 = vpop.f32.mrf.mxu0
        %v627 = vpop.f32.mrf.mxu0
        %v628 = vpop.f32.mrf.mxu0
        %629 = vdwg.mxu0
        %v630 = vmul.f32 %v625, 0.35355338
        %v631 = vpack.c.bf16 %v630, %v630
        %v632 = vpack.c.bf16 %v625, %v625
        %634 = vrot.lane.b32.xlu0 %v632, 96
        %v635 = vpop.permute.xlu0 %634
        %vm636 = vcmask 64512
        %v638 = vsel %vm636, %v631, 0
        %v641 = vsel %vm636, %v635, 0
        %643 = vmatprep.subr.bf16.mxu0 0
        %644 = vmatpush1.bf16.xpose.msra.mxu0 0
        %645 = vmatprep.subr.bf16.mxu0 0
        %646 = vmatpush1.bf16.xpose.msra.mxu0 0
        %647 = vmatprep.subr.bf16.mxu0 0
        %648 = vmatpush1.bf16.xpose.msra.mxu0 0
        %649 = vmatprep.subr.bf16.mxu0 0
        %650 = vmatpush1.bf16.xpose.msra.mxu0 0
        %651 = vmatprep.subr.bf16.mxu0 0
        %652 = vmatpush1.bf16.xpose.msra.mxu0 0
        %653 = vmatprep.subr.bf16.mxu0 0
        %654 = vmatpush1.bf16.xpose.msra.mxu0 0
        %655 = vmatprep.subr.bf16.mxu0 0
        %656 = vmatpush1.bf16.xpose.msra.mxu0 0
        %657 = vmatprep.subr.bf16.mxu0 0
        %658 = vmatpush1.bf16.xpose.msra.mxu0 %v641
        %659 = vmatprep.subr.bf16.mxu0 0
        %660 = vmatpush2.bf16.xpose.msra.mxu0 0
        %661 = vmatprep.subr.bf16.mxu0 0
        %662 = vmatpush2.bf16.xpose.msra.mxu0 0
        %663 = vmatprep.subr.bf16.mxu0 0
        %664 = vmatpush2.bf16.xpose.msra.mxu0 0
        %665 = vmatprep.subr.bf16.mxu0 0
        %666 = vmatpush2.bf16.xpose.msra.mxu0 0
        %667 = vmatprep.subr.bf16.mxu0 0
        %668 = vmatpush2.bf16.xpose.msra.mxu0 0
        %669 = vmatprep.subr.bf16.mxu0 0
        %670 = vmatpush2.bf16.xpose.msra.mxu0 0
        %671 = vmatprep.subr.bf16.mxu0 0
        %672 = vmatpush2.bf16.xpose.msra.mxu0 0
        %673 = vmatprep.subr.bf16.mxu0 0
        %674 = vmatpush2.bf16.xpose.msra.mxu0 0
        %675 = vmatprep.mubr.bf16.mxu0 0
        %676 = vmatmul.mubr.bf16.gmra.mxu0 %v638
        %v677 = vpop.f32.mrf.mxu0
        %v678 = vadd.f32 %v536, %v677
        %v679 = vpop.f32.mrf.mxu0
        %v680 = vpop.f32.mrf.mxu0
        %v681 = vpop.f32.mrf.mxu0
        %682 = vdwg.mxu0
        %v683 = vmul.f32 %v678, 1.442695
        %v684 = vpow.pop %v683
        %v685 = vsel %vm636, %v684, 0.0
        %686 = vadd.xlane.f32.xlu0 %v685
        %v687 = vpop.xlane.xlu0 %686
        %v688 = vrcp.pop %v687
        %v689 = vmul.f32 %v684, %v688
        %v690 = vpack.c.bf16 %v689, %v689
        %691 = vrot.lane.b32.xlu0 %v632, 64
        %v692 = vpop.permute.xlu0 %691
        %v694 = vsel %vm636, %v690, 0
        %vm696 = vcmask 1043456
        %v698 = vsel %vm696, %v692, 0
        %700 = vmatprep.subr.bf16.mxu0 0
        %701 = vmatpush1.bf16.msra.mxu0 0
        %702 = vmatprep.subr.bf16.mxu0 0
        %703 = vmatpush1.bf16.msra.mxu0 0
        %704 = vmatprep.subr.bf16.mxu0 0
        %705 = vmatpush1.bf16.msra.mxu0 0
        %706 = vmatprep.subr.bf16.mxu0 0
        %707 = vmatpush1.bf16.msra.mxu0 0
        %708 = vmatprep.subr.bf16.mxu0 0
        %709 = vmatpush1.bf16.msra.mxu0 0
        %710 = vmatprep.subr.bf16.mxu0 0
        %711 = vmatpush1.bf16.msra.mxu0 0
        %712 = vmatprep.subr.bf16.mxu0 0
        %713 = vmatpush1.bf16.msra.mxu0 0
        %714 = vmatprep.subr.bf16.mxu0 0
        %715 = vmatpush1.bf16.msra.mxu0 %v698
        %716 = vmatprep.subr.bf16.mxu0 0
        %717 = vmatpush2.bf16.msra.mxu0 0
        %718 = vmatprep.subr.bf16.mxu0 0
        %719 = vmatpush2.bf16.msra.mxu0 0
        %720 = vmatprep.subr.bf16.mxu0 0
        %721 = vmatpush2.bf16.msra.mxu0 0
        %722 = vmatprep.subr.bf16.mxu0 0
        %723 = vmatpush2.bf16.msra.mxu0 0
        %724 = vmatprep.subr.bf16.mxu0 0
        %725 = vmatpush2.bf16.msra.mxu0 0
        %726 = vmatprep.subr.bf16.mxu0 0
        %727 = vmatpush2.bf16.msra.mxu0 0
        %728 = vmatprep.subr.bf16.mxu0 0
        %729 = vmatpush2.bf16.msra.mxu0 0
        %730 = vmatprep.subr.bf16.mxu0 0
        %731 = vmatpush2.bf16.msra.mxu0 0
        %732 = vmatprep.mubr.bf16.mxu0 0
        %733 = vmatmul.mubr.bf16.gmra.mxu0 %v694
        %v734 = vpop.f32.mrf.mxu0
        %v735 = vadd.f32 0.0, %v734
        %v736 = vpop.f32.mrf.mxu0
        %v737 = vpop.f32.mrf.mxu0
        %v738 = vpop.f32.mrf.mxu0
        %739 = vdwg.mxu0
        %741 = vrot.lane.b32.xlu0 %v631, 120
        %v742 = vpop.permute.xlu0 %741
        %743 = vrot.lane.b32.xlu0 %v632, 88
        %v744 = vpop.permute.xlu0 %743
        %v746 = vsel %vm636, %v742, 0
        %v749 = vsel %vm636, %v744, 0
        %751 = vmatprep.subr.bf16.mxu0 0
        %752 = vmatpush1.bf16.xpose.msra.mxu0 0
        %753 = vmatprep.subr.bf16.mxu0 0
        %754 = vmatpush1.bf16.xpose.msra.mxu0 0
        %755 = vmatprep.subr.bf16.mxu0 0
        %756 = vmatpush1.bf16.xpose.msra.mxu0 0
        %757 = vmatprep.subr.bf16.mxu0 0
        %758 = vmatpush1.bf16.xpose.msra.mxu0 0
        %759 = vmatprep.subr.bf16.mxu0 0
        %760 = vmatpush1.bf16.xpose.msra.mxu0 0
        %761 = vmatprep.subr.bf16.mxu0 0
        %762 = vmatpush1.bf16.xpose.msra.mxu0 0
        %763 = vmatprep.subr.bf16.mxu0 0
        %764 = vmatpush1.bf16.xpose.msra.mxu0 0
        %765 = vmatprep.subr.bf16.mxu0 0
        %766 = vmatpush1.bf16.xpose.msra.mxu0 %v749
        %767 = vmatprep.subr.bf16.mxu0 0
        %768 = vmatpush2.bf16.xpose.msra.mxu0 0
        %769 = vmatprep.subr.bf16.mxu0 0
        %770 = vmatpush2.bf16.xpose.msra.mxu0 0
        %771 = vmatprep.subr.bf16.mxu0 0
        %772 = vmatpush2.bf16.xpose.msra.mxu0 0
        %773 = vmatprep.subr.bf16.mxu0 0
        %774 = vmatpush2.bf16.xpose.msra.mxu0 0
        %775 = vmatprep.subr.bf16.mxu0 0
        %776 = vmatpush2.bf16.xpose.msra.mxu0 0
        %777 = vmatprep.subr.bf16.mxu0 0
        %778 = vmatpush2.bf16.xpose.msra.mxu0 0
        %779 = vmatprep.subr.bf16.mxu0 0
        %780 = vmatpush2.bf16.xpose.msra.mxu0 0
        %781 = vmatprep.subr.bf16.mxu0 0
        %782 = vmatpush2.bf16.xpose.msra.mxu0 0
        %783 = vmatprep.mubr.bf16.mxu0 0
        %784 = vmatmul.mubr.bf16.gmra.mxu0 %v746
        %v785 = vpop.f32.mrf.mxu0
        %v786 = vadd.f32 %v536, %v785
        %v787 = vpop.f32.mrf.mxu0
        %v788 = vpop.f32.mrf.mxu0
        %v789 = vpop.f32.mrf.mxu0
        %790 = vdwg.mxu0
        %v791 = vmul.f32 %v786, 1.442695
        %v792 = vpow.pop %v791
        %v793 = vsel %vm636, %v792, 0.0
        %794 = vadd.xlane.f32.xlu0 %v793
        %v795 = vpop.xlane.xlu0 %794
        %v796 = vrcp.pop %v795
        %v797 = vmul.f32 %v792, %v796
        %v798 = vpack.c.bf16 %v797, %v797
        %799 = vrot.lane.b32.xlu0 %v632, 56
        %v800 = vpop.permute.xlu0 %799
        %v802 = vsel %vm636, %v798, 0
        %v805 = vsel %vm696, %v800, 0
        %807 = vmatprep.subr.bf16.mxu0 0
        %808 = vmatpush1.bf16.msra.mxu0 0
        %809 = vmatprep.subr.bf16.mxu0 0
        %810 = vmatpush1.bf16.msra.mxu0 0
        %811 = vmatprep.subr.bf16.mxu0 0
        %812 = vmatpush1.bf16.msra.mxu0 0
        %813 = vmatprep.subr.bf16.mxu0 0
        %814 = vmatpush1.bf16.msra.mxu0 0
        %815 = vmatprep.subr.bf16.mxu0 0
        %816 = vmatpush1.bf16.msra.mxu0 0
        %817 = vmatprep.subr.bf16.mxu0 0
        %818 = vmatpush1.bf16.msra.mxu0 0
        %819 = vmatprep.subr.bf16.mxu0 0
        %820 = vmatpush1.bf16.msra.mxu0 0
        %821 = vmatprep.subr.bf16.mxu0 0
        %822 = vmatpush1.bf16.msra.mxu0 %v805
        %823 = vmatprep.subr.bf16.mxu0 0
        %824 = vmatpush2.bf16.msra.mxu0 0
        %825 = vmatprep.subr.bf16.mxu0 0
        %826 = vmatpush2.bf16.msra.mxu0 0
        %827 = vmatprep.subr.bf16.mxu0 0
        %828 = vmatpush2.bf16.msra.mxu0 0
        %829 = vmatprep.subr.bf16.mxu0 0
        %830 = vmatpush2.bf16.msra.mxu0 0
        %831 = vmatprep.subr.bf16.mxu0 0
        %832 = vmatpush2.bf16.msra.mxu0 0
        %833 = vmatprep.subr.bf16.mxu0 0
        %834 = vmatpush2.bf16.msra.mxu0 0
        %835 = vmatprep.subr.bf16.mxu0 0
        %836 = vmatpush2.bf16.msra.mxu0 0
        %837 = vmatprep.subr.bf16.mxu0 0
        %838 = vmatpush2.bf16.msra.mxu0 0
        %839 = vmatprep.mubr.bf16.mxu0 0
        %840 = vmatmul.mubr.bf16.gmra.mxu0 %v802
        %v841 = vpop.f32.mrf.mxu0
        %v842 = vadd.f32 0.0, %v841
        %v843 = vpop.f32.mrf.mxu0
        %v844 = vpop.f32.mrf.mxu0
        %v845 = vpop.f32.mrf.mxu0
        %846 = vdwg.mxu0
        %847 = vrot.lane.b32.xlu0 %v631, 112
        %v848 = vpop.permute.xlu0 %847
        %849 = vrot.lane.b32.xlu0 %v632, 80
        %v850 = vpop.permute.xlu0 %849
        %v852 = vsel %vm636, %v848, 0
        %v855 = vsel %vm636, %v850, 0
        %857 = vmatprep.subr.bf16.mxu0 0
        %858 = vmatpush1.bf16.xpose.msra.mxu0 0
        %859 = vmatprep.subr.bf16.mxu0 0
        %860 = vmatpush1.bf16.xpose.msra.mxu0 0
        %861 = vmatprep.subr.bf16.mxu0 0
        %862 = vmatpush1.bf16.xpose.msra.mxu0 0
        %863 = vmatprep.subr.bf16.mxu0 0
        %864 = vmatpush1.bf16.xpose.msra.mxu0 0
        %865 = vmatprep.subr.bf16.mxu0 0
        %866 = vmatpush1.bf16.xpose.msra.mxu0 0
        %867 = vmatprep.subr.bf16.mxu0 0
        %868 = vmatpush1.bf16.xpose.msra.mxu0 0
        %869 = vmatprep.subr.bf16.mxu0 0
        %870 = vmatpush1.bf16.xpose.msra.mxu0 0
        %871 = vmatprep.subr.bf16.mxu0 0
        %872 = vmatpush1.bf16.xpose.msra.mxu0 %v855
        %873 = vmatprep.subr.bf16.mxu0 0
        %874 = vmatpush2.bf16.xpose.msra.mxu0 0
        %875 = vmatprep.subr.bf16.mxu0 0
        %876 = vmatpush2.bf16.xpose.msra.mxu0 0
        %877 = vmatprep.subr.bf16.mxu0 0
        %878 = vmatpush2.bf16.xpose.msra.mxu0 0
        %879 = vmatprep.subr.bf16.mxu0 0
        %880 = vmatpush2.bf16.xpose.msra.mxu0 0
        %881 = vmatprep.subr.bf16.mxu0 0
        %882 = vmatpush2.bf16.xpose.msra.mxu0 0
        %883 = vmatprep.subr.bf16.mxu0 0
        %884 = vmatpush2.bf16.xpose.msra.mxu0 0
        %885 = vmatprep.subr.bf16.mxu0 0
        %886 = vmatpush2.bf16.xpose.msra.mxu0 0
        %887 = vmatprep.subr.bf16.mxu0 0
        %888 = vmatpush2.bf16.xpose.msra.mxu0 0
        %889 = vmatprep.mubr.bf16.mxu0 0
        %890 = vmatmul.mubr.bf16.gmra.mxu0 %v852
        %v891 = vpop.f32.mrf.mxu0
        %v892 = vadd.f32 %v536, %v891
        %v893 = vpop.f32.mrf.mxu0
        %v894 = vpop.f32.mrf.mxu0
        %v895 = vpop.f32.mrf.mxu0
        %896 = vdwg.mxu0
        %v897 = vmul.f32 %v892, 1.442695
        %v898 = vpow.pop %v897
        %v899 = vsel %vm636, %v898, 0.0
        %900 = vadd.xlane.f32.xlu0 %v899
        %v901 = vpop.xlane.xlu0 %900
        %v902 = vrcp.pop %v901
        %v903 = vmul.f32 %v898, %v902
        %v904 = vpack.c.bf16 %v903, %v903
        %905 = vrot.lane.b32.xlu0 %v632, 48
        %v906 = vpop.permute.xlu0 %905
        %v908 = vsel %vm636, %v904, 0
        %v911 = vsel %vm696, %v906, 0
        %913 = vmatprep.subr.bf16.mxu0 0
        %914 = vmatpush1.bf16.msra.mxu0 0
        %915 = vmatprep.subr.bf16.mxu0 0
        %916 = vmatpush1.bf16.msra.mxu0 0
        %917 = vmatprep.subr.bf16.mxu0 0
        %918 = vmatpush1.bf16.msra.mxu0 0
        %919 = vmatprep.subr.bf16.mxu0 0
        %920 = vmatpush1.bf16.msra.mxu0 0
        %921 = vmatprep.subr.bf16.mxu0 0
        %922 = vmatpush1.bf16.msra.mxu0 0
        %923 = vmatprep.subr.bf16.mxu0 0
        %924 = vmatpush1.bf16.msra.mxu0 0
        %925 = vmatprep.subr.bf16.mxu0 0
        %926 = vmatpush1.bf16.msra.mxu0 0
        %927 = vmatprep.subr.bf16.mxu0 0
        %928 = vmatpush1.bf16.msra.mxu0 %v911
        %929 = vmatprep.subr.bf16.mxu0 0
        %930 = vmatpush2.bf16.msra.mxu0 0
        %931 = vmatprep.subr.bf16.mxu0 0
        %932 = vmatpush2.bf16.msra.mxu0 0
        %933 = vmatprep.subr.bf16.mxu0 0
        %934 = vmatpush2.bf16.msra.mxu0 0
        %935 = vmatprep.subr.bf16.mxu0 0
        %936 = vmatpush2.bf16.msra.mxu0 0
        %937 = vmatprep.subr.bf16.mxu0 0
        %938 = vmatpush2.bf16.msra.mxu0 0
        %939 = vmatprep.subr.bf16.mxu0 0
        %940 = vmatpush2.bf16.msra.mxu0 0
        %941 = vmatprep.subr.bf16.mxu0 0
        %942 = vmatpush2.bf16.msra.mxu0 0
        %943 = vmatprep.subr.bf16.mxu0 0
        %944 = vmatpush2.bf16.msra.mxu0 0
        %945 = vmatprep.mubr.bf16.mxu0 0
        %946 = vmatmul.mubr.bf16.gmra.mxu0 %v908
        %v947 = vpop.f32.mrf.mxu0
        %v948 = vadd.f32 0.0, %v947
        %v949 = vpop.f32.mrf.mxu0
        %v950 = vpop.f32.mrf.mxu0
        %v951 = vpop.f32.mrf.mxu0
        %952 = vdwg.mxu0
        %953 = vrot.lane.b32.xlu0 %v631, 104
        %v954 = vpop.permute.xlu0 %953
        %955 = vrot.lane.b32.xlu0 %v632, 72
        %v956 = vpop.permute.xlu0 %955
        %v958 = vsel %vm636, %v954, 0
        %v961 = vsel %vm636, %v956, 0
        %963 = vmatprep.subr.bf16.mxu0 0
        %964 = vmatpush1.bf16.xpose.msra.mxu0 0
        %965 = vmatprep.subr.bf16.mxu0 0
        %966 = vmatpush1.bf16.xpose.msra.mxu0 0
        %967 = vmatprep.subr.bf16.mxu0 0
        %968 = vmatpush1.bf16.xpose.msra.mxu0 0
        %969 = vmatprep.subr.bf16.mxu0 0
        %970 = vmatpush1.bf16.xpose.msra.mxu0 0
        %971 = vmatprep.subr.bf16.mxu0 0
        %972 = vmatpush1.bf16.xpose.msra.mxu0 0
        %973 = vmatprep.subr.bf16.mxu0 0
        %974 = vmatpush1.bf16.xpose.msra.mxu0 0
        %975 = vmatprep.subr.bf16.mxu0 0
        %976 = vmatpush1.bf16.xpose.msra.mxu0 0
        %977 = vmatprep.subr.bf16.mxu0 0
        %978 = vmatpush1.bf16.xpose.msra.mxu0 %v961
        %979 = vmatprep.subr.bf16.mxu0 0
        %980 = vmatpush2.bf16.xpose.msra.mxu0 0
        %981 = vmatprep.subr.bf16.mxu0 0
        %982 = vmatpush2.bf16.xpose.msra.mxu0 0
        %983 = vmatprep.subr.bf16.mxu0 0
        %984 = vmatpush2.bf16.xpose.msra.mxu0 0
        %985 = vmatprep.subr.bf16.mxu0 0
        %986 = vmatpush2.bf16.xpose.msra.mxu0 0
        %987 = vmatprep.subr.bf16.mxu0 0
        %988 = vmatpush2.bf16.xpose.msra.mxu0 0
        %989 = vmatprep.subr.bf16.mxu0 0
        %990 = vmatpush2.bf16.xpose.msra.mxu0 0
        %991 = vmatprep.subr.bf16.mxu0 0
        %992 = vmatpush2.bf16.xpose.msra.mxu0 0
        %993 = vmatprep.subr.bf16.mxu0 0
        %994 = vmatpush2.bf16.xpose.msra.mxu0 0
        %995 = vmatprep.mubr.bf16.mxu0 0
        %996 = vmatmul.mubr.bf16.gmra.mxu0 %v958
        %v997 = vpop.f32.mrf.mxu0
        %v998 = vadd.f32 %v536, %v997
        %v999 = vpop.f32.mrf.mxu0
        %v1000 = vpop.f32.mrf.mxu0
        %v1001 = vpop.f32.mrf.mxu0
        %1002 = vdwg.mxu0
        %v1003 = vmul.f32 %v998, 1.442695
        %v1004 = vpow.pop %v1003
        %v1005 = vsel %vm636, %v1004, 0.0
        %1006 = vadd.xlane.f32.xlu0 %v1005
        %v1007 = vpop.xlane.xlu0 %1006
        %v1008 = vrcp.pop %v1007
        %v1009 = vmul.f32 %v1004, %v1008
        %v1010 = vpack.c.bf16 %v1009, %v1009
        %1011 = vrot.lane.b32.xlu0 %v632, 40
        %v1012 = vpop.permute.xlu0 %1011
        %v1014 = vsel %vm636, %v1010, 0
        %v1017 = vsel %vm696, %v1012, 0
        %1019 = vmatprep.subr.bf16.mxu0 0
        %1020 = vmatpush1.bf16.msra.mxu0 0
        %1021 = vmatprep.subr.bf16.mxu0 0
        %1022 = vmatpush1.bf16.msra.mxu0 0
        %1023 = vmatprep.subr.bf16.mxu0 0
        %1024 = vmatpush1.bf16.msra.mxu0 0
        %1025 = vmatprep.subr.bf16.mxu0 0
        %1026 = vmatpush1.bf16.msra.mxu0 0
        %1027 = vmatprep.subr.bf16.mxu0 0
        %1028 = vmatpush1.bf16.msra.mxu0 0
        %1029 = vmatprep.subr.bf16.mxu0 0
        %1030 = vmatpush1.bf16.msra.mxu0 0
        %1031 = vmatprep.subr.bf16.mxu0 0
        %1032 = vmatpush1.bf16.msra.mxu0 0
        %1033 = vmatprep.subr.bf16.mxu0 0
        %1034 = vmatpush1.bf16.msra.mxu0 %v1017
        %1035 = vmatprep.subr.bf16.mxu0 0
        %1036 = vmatpush2.bf16.msra.mxu0 0
        %1037 = vmatprep.subr.bf16.mxu0 0
        %1038 = vmatpush2.bf16.msra.mxu0 0
        %1039 = vmatprep.subr.bf16.mxu0 0
        %1040 = vmatpush2.bf16.msra.mxu0 0
        %1041 = vmatprep.subr.bf16.mxu0 0
        %1042 = vmatpush2.bf16.msra.mxu0 0
        %1043 = vmatprep.subr.bf16.mxu0 0
        %1044 = vmatpush2.bf16.msra.mxu0 0
        %1045 = vmatprep.subr.bf16.mxu0 0
        %1046 = vmatpush2.bf16.msra.mxu0 0
        %1047 = vmatprep.subr.bf16.mxu0 0
        %1048 = vmatpush2.bf16.msra.mxu0 0
        %1049 = vmatprep.subr.bf16.mxu0 0
        %1050 = vmatpush2.bf16.msra.mxu0 0
        %1051 = vmatprep.mubr.bf16.mxu0 0
        %1052 = vmatmul.mubr.bf16.gmra.mxu0 %v1014
        %v1053 = vpop.f32.mrf.mxu0
        %v1054 = vadd.f32 0.0, %v1053
        %v1055 = vpop.f32.mrf.mxu0
        %v1056 = vpop.f32.mrf.mxu0
        %v1057 = vpop.f32.mrf.mxu0
        %1058 = vdwg.mxu0
        %1060 = vrot.lane.b32.xlu0 %v842, 8
        %v1061 = vpop.permute.xlu0 %1060
        %1064 = vrot.lane.b32.xlu0 %v948, 16
        %v1065 = vpop.permute.xlu0 %1064
        %1068 = vrot.lane.b32.xlu0 %v1054, 24
        %v1069 = vpop.permute.xlu0 %1068
        %v1071 = vsel %vm636, %v735, %v1061
        %vm1072 = vcmask 130048
        %v1073 = vsel %vm1072, %v1071, %v1065
        %vm1074 = vcmask 195584
        %v1075 = vsel %vm1074, %v1073, %v1069
        %v1076 = vpack.c.bf16 %v1075, %v1075
        %v1077 = vld [vmem:[%s4] sm:$0xf]
        %v1078 = vld [vmem:[%s4 + $0x4] sm:$0xf]
        %v1079 = vld [vmem:[%s4 + $0x8] sm:$0xf]
        %v1080 = vld [vmem:[%s4 + $0xc] sm:$0xf]
        %v1081 = vlaneseq
        %v1082 = vshrl.u32 %v1081, 7
        %v1083 = vsub.s32 2, %v1082
        %v1084 = vrot.slane %v537, %v1083
        %v1089 = vunpack.c.l.b16 %v1077
        %v1090 = vunpack.c.l.b16 %v1078
        %v1091 = vunpack.c.l.b16 %v1079
        %v1092 = vunpack.c.l.b16 %v1080
        %v1093 = vpack.c.b16 %v1090, %v1089
        %v1094 = vpack.c.b16 %v1092, %v1091
        %v1098 = vsel %vm538, %v1076, 0
        %1100 = vmatprep.subr.bf16.mxu0 0
        %1101 = vmatpush1.bf16.msra.mxu0 0
        %1102 = vmatprep.subr.bf16.mxu0 0
        %1103 = vmatpush1.bf16.msra.mxu0 0
        %1104 = vmatprep.subr.bf16.mxu0 0
        %1105 = vmatpush1.bf16.msra.mxu0 0
        %1106 = vmatprep.subr.bf16.mxu0 0
        %1107 = vmatpush1.bf16.msra.mxu0 0
        %1108 = vmatprep.subr.bf16.mxu0 0
        %1109 = vmatpush1.bf16.msra.mxu0 0
        %1110 = vmatprep.subr.bf16.mxu0 0
        %1111 = vmatpush1.bf16.msra.mxu0 0
        %1112 = vmatprep.subr.bf16.mxu0 0
        %1113 = vmatpush1.bf16.msra.mxu0 %v1094
        %1114 = vmatprep.subr.bf16.mxu0 0
        %1115 = vmatpush1.bf16.msra.mxu0 %v1093
        %1116 = vmatprep.subr.bf16.mxu0 0
        %1117 = vmatpush2.bf16.msra.mxu0 0
        %1118 = vmatprep.subr.bf16.mxu0 0
        %1119 = vmatpush2.bf16.msra.mxu0 0
        %1120 = vmatprep.subr.bf16.mxu0 0
        %1121 = vmatpush2.bf16.msra.mxu0 0
        %1122 = vmatprep.subr.bf16.mxu0 0
        %1123 = vmatpush2.bf16.msra.mxu0 0
        %1124 = vmatprep.subr.bf16.mxu0 0
        %1125 = vmatpush2.bf16.msra.mxu0 0
        %1126 = vmatprep.subr.bf16.mxu0 0
        %1127 = vmatpush2.bf16.msra.mxu0 0
        %1128 = vmatprep.subr.bf16.mxu0 0
        %1129 = vmatpush2.bf16.msra.mxu0 0
        %1130 = vmatprep.subr.bf16.mxu0 0
        %1131 = vmatpush2.bf16.msra.mxu0 0
        %1132 = vmatprep.mubr.bf16.mxu0 0
        %1133 = vmatmul.mubr.bf16.gmra.mxu0 %v1098
        %v1134 = vpop.f32.mrf.mxu0
        %v1135 = vadd.f32 %v1084, %v1134
        %v1136 = vpop.f32.mrf.mxu0
        %v1137 = vpop.f32.mrf.mxu0
        %v1138 = vpop.f32.mrf.mxu0
        %1139 = vdwg.mxu0
        %v1140 = vadd.f32 %v528, %v1135
        %v1141 = vsel %vm538, %v1140, 0.0
        %1142 = vadd.xlane.f32.xlu0 %v1141
        %v1143 = vpop.xlane.xlu0 %1142
        %v1144 = vmul.f32 %v1143, %v542
        %v1145 = vsub.f32 %v1140, %v1144
        %v1146 = vmul.f32 %v1145, %v1145
        %v1147 = vsel %vm538, %v1146, 0.0
        %1148 = vadd.xlane.f32.xlu0 %v1147
        %v1149 = vpop.xlane.xlu0 %1148
        %v1150 = vmul.f32 %v1149, %v542
        %v1151 = vadd.f32 %v1150, 1e-06
        %v1152 = vrsqrt.pop %v1151
        %v1153 = vmul.f32 %v1145, %v1152
        %v1154 = vlaneseq
        %v1155 = vshrl.u32 %v1154, 7
        %v1156 = vsub.s32 3, %v1155
        %v1157 = vrot.slane %v537, %v1156
        %v1158 = vmul.f32 %v1153, %v1157
        %v1159 = vlaneseq
        %v1160 = vshrl.u32 %v1159, 7
        %v1161 = vsub.s32 4, %v1160
        %v1162 = vrot.slane %v537, %v1161
        %v1163 = vadd.f32 %v1158, %v1162
        %v1164 = vpack.c.bf16 %v1163, %v1163
        %v1165 = vld [vmem:[%s5] sm:$0xf]
        %v1166 = vld [vmem:[%s5 + $0x4] sm:$0xf]
        %v1167 = vld [vmem:[%s5 + $0x8] sm:$0xf]
        %v1168 = vld [vmem:[%s5 + $0xc] sm:$0xf]
        %v1169 = vld [vmem:[%s8] sm:$0x1]
        %v1171 = vlaneseq
        %v1172 = vshrl.u32 %v1171, 7
        %v1173 = vsub.s32 0, %v1172
        %v1174 = vrot.slane %v1169, %v1173
        %v1180 = vunpack.c.l.b16 %v1165
        %v1181 = vunpack.c.l.b16 %v1166
        %v1182 = vunpack.c.l.b16 %v1167
        %v1183 = vunpack.c.l.b16 %v1168
        %v1184 = vpack.c.b16 %v1181, %v1180
        %v1185 = vpack.c.b16 %v1183, %v1182
        %v1189 = vsel %vm538, %v1164, 0
        %1191 = vmatprep.subr.bf16.mxu0 0
        %1192 = vmatpush1.bf16.msra.mxu0 0
        %1193 = vmatprep.subr.bf16.mxu0 0
        %1194 = vmatpush1.bf16.msra.mxu0 0
        %1195 = vmatprep.subr.bf16.mxu0 0
        %1196 = vmatpush1.bf16.msra.mxu0 0
        %1197 = vmatprep.subr.bf16.mxu0 0
        %1198 = vmatpush1.bf16.msra.mxu0 0
        %1199 = vmatprep.subr.bf16.mxu0 0
        %1200 = vmatpush1.bf16.msra.mxu0 0
        %1201 = vmatprep.subr.bf16.mxu0 0
        %1202 = vmatpush1.bf16.msra.mxu0 0
        %1203 = vmatprep.subr.bf16.mxu0 0
        %1204 = vmatpush1.bf16.msra.mxu0 %v1185
        %1205 = vmatprep.subr.bf16.mxu0 0
        %1206 = vmatpush1.bf16.msra.mxu0 %v1184
        %1207 = vmatprep.subr.bf16.mxu0 0
        %1208 = vmatpush2.bf16.msra.mxu0 0
        %1209 = vmatprep.subr.bf16.mxu0 0
        %1210 = vmatpush2.bf16.msra.mxu0 0
        %1211 = vmatprep.subr.bf16.mxu0 0
        %1212 = vmatpush2.bf16.msra.mxu0 0
        %1213 = vmatprep.subr.bf16.mxu0 0
        %1214 = vmatpush2.bf16.msra.mxu0 0
        %1215 = vmatprep.subr.bf16.mxu0 0
        %1216 = vmatpush2.bf16.msra.mxu0 0
        %1217 = vmatprep.subr.bf16.mxu0 0
        %1218 = vmatpush2.bf16.msra.mxu0 0
        %1219 = vmatprep.subr.bf16.mxu0 0
        %1220 = vmatpush2.bf16.msra.mxu0 0
        %1221 = vmatprep.subr.bf16.mxu0 0
        %1222 = vmatpush2.bf16.msra.mxu0 0
        %1223 = vmatprep.mubr.bf16.mxu0 0
        %1224 = vmatmul.mubr.bf16.gmra.mxu0 %v1189
        %v1225 = vpop.f32.mrf.mxu0
        %v1226 = vadd.f32 %v1174, %v1225
        %v1227 = vpop.f32.mrf.mxu0
        %v1228 = vpop.f32.mrf.mxu0
        %v1229 = vpop.f32.mrf.mxu0
        %1230 = vdwg.mxu0
        %v1231 = vmul.f32 %v1226, %v1226
        %v1232 = vmul.f32 %v1226, %v1231
        %v1233 = vmul.f32 %v1232, 0.044715
        %v1234 = vadd.f32 %v1226, %v1233
        %v1235 = vmul.f32 %v1234, 0.7978846
        %v1236 = vtanh.pop %v1235
        %v1237 = vadd.f32 %v1236, 1.0
        %v1238 = vmul.f32 %v1237, 0.5
        %v1239 = vmul.f32 %v1226, %v1238
        %v1240 = vpack.c.bf16 %v1239, %v1239
        %v1241 = vld [vmem:[%s6] sm:$0xf]
        %v1242 = vld [vmem:[%s6 + $0x4] sm:$0xf]
        %v1243 = vld [vmem:[%s6 + $0x8] sm:$0xf]
        %v1244 = vld [vmem:[%s6 + $0xc] sm:$0xf]
        %v1245 = vld [vmem:[%s6 + $0x10] sm:$0xf]
        %v1246 = vld [vmem:[%s6 + $0x14] sm:$0xf]
        %v1247 = vld [vmem:[%s6 + $0x18] sm:$0xf]
        %v1248 = vld [vmem:[%s6 + $0x1c] sm:$0xf]
        %v1249 = vld [vmem:[%s6 + $0x20] sm:$0xf]
        %v1250 = vld [vmem:[%s6 + $0x24] sm:$0xf]
        %v1251 = vld [vmem:[%s6 + $0x28] sm:$0xf]
        %v1252 = vld [vmem:[%s6 + $0x2c] sm:$0xf]
        %v1253 = vld [vmem:[%s6 + $0x30] sm:$0xf]
        %v1254 = vld [vmem:[%s6 + $0x34] sm:$0xf]
        %v1255 = vld [vmem:[%s6 + $0x38] sm:$0xf]
        %v1256 = vld [vmem:[%s6 + $0x3c] sm:$0xf]
        %v1257 = vlaneseq
        %v1258 = vshrl.u32 %v1257, 7
        %v1259 = vsub.s32 5, %v1258
        %v1260 = vrot.slane %v537, %v1259
        %v1277 = vunpack.c.l.b16 %v1241
        %v1278 = vunpack.c.l.b16 %v1242
        %v1279 = vunpack.c.l.b16 %v1243
        %v1280 = vunpack.c.l.b16 %v1244
        %v1281 = vunpack.c.l.b16 %v1245
        %v1282 = vunpack.c.l.b16 %v1246
        %v1283 = vunpack.c.l.b16 %v1247
        %v1284 = vunpack.c.l.b16 %v1248
        %v1285 = vunpack.c.l.b16 %v1249
        %v1286 = vunpack.c.l.b16 %v1250
        %v1287 = vunpack.c.l.b16 %v1251
        %v1288 = vunpack.c.l.b16 %v1252
        %v1289 = vunpack.c.l.b16 %v1253
        %v1290 = vunpack.c.l.b16 %v1254
        %v1291 = vunpack.c.l.b16 %v1255
        %v1292 = vunpack.c.l.b16 %v1256
        %v1293 = vpack.c.b16 %v1278, %v1277
        %v1294 = vpack.c.b16 %v1280, %v1279
        %v1295 = vpack.c.b16 %v1282, %v1281
        %v1296 = vpack.c.b16 %v1284, %v1283
        %v1297 = vpack.c.b16 %v1286, %v1285
        %v1298 = vpack.c.b16 %v1288, %v1287
        %v1299 = vpack.c.b16 %v1290, %v1289
        %v1300 = vpack.c.b16 %v1292, %v1291
        %1309 = vmatprep.subr.bf16.mxu0 0
        %1310 = vmatpush1.bf16.msra.mxu0 %v1300
        %1311 = vmatprep.subr.bf16.mxu0 0
        %1312 = vmatpush1.bf16.msra.mxu0 %v1299
        %1313 = vmatprep.subr.bf16.mxu0 0
        %1314 = vmatpush1.bf16.msra.mxu0 %v1298
        %1315 = vmatprep.subr.bf16.mxu0 0
        %1316 = vmatpush1.bf16.msra.mxu0 %v1297
        %1317 = vmatprep.subr.bf16.mxu0 0
        %1318 = vmatpush1.bf16.msra.mxu0 %v1296
        %1319 = vmatprep.subr.bf16.mxu0 0
        %1320 = vmatpush1.bf16.msra.mxu0 %v1295
        %1321 = vmatprep.subr.bf16.mxu0 0
        %1322 = vmatpush1.bf16.msra.mxu0 %v1294
        %1323 = vmatprep.subr.bf16.mxu0 0
        %1324 = vmatpush1.bf16.msra.mxu0 %v1293
        %1325 = vmatprep.subr.bf16.mxu0 0
        %1326 = vmatpush2.bf16.msra.mxu0 0
        %1327 = vmatprep.subr.bf16.mxu0 0
        %1328 = vmatpush2.bf16.msra.mxu0 0
        %1329 = vmatprep.subr.bf16.mxu0 0
        %1330 = vmatpush2.bf16.msra.mxu0 0
        %1331 = vmatprep.subr.bf16.mxu0 0
        %1332 = vmatpush2.bf16.msra.mxu0 0
        %1333 = vmatprep.subr.bf16.mxu0 0
        %1334 = vmatpush2.bf16.msra.mxu0 0
        %1335 = vmatprep.subr.bf16.mxu0 0
        %1336 = vmatpush2.bf16.msra.mxu0 0
        %1337 = vmatprep.subr.bf16.mxu0 0
        %1338 = vmatpush2.bf16.msra.mxu0 0
        %1339 = vmatprep.subr.bf16.mxu0 0
        %1340 = vmatpush2.bf16.msra.mxu0 0
        %1341 = vmatprep.mubr.bf16.mxu0 0
        %1342 = vmatmul.mubr.bf16.gmra.mxu0 %v1240
        %v1343 = vpop.f32.mrf.mxu0
        %v1344 = vadd.f32 %v1260, %v1343
        %v1345 = vpop.f32.mrf.mxu0
        %v1346 = vpop.f32.mrf.mxu0
        %v1347 = vpop.f32.mrf.mxu0
        %1348 = vdwg.mxu0
        %v1349 = vadd.f32 %v1140, %v1344
        %s1350 = scalar_lea.vmem %s9, 8
        %v1351 = vld [vmem:[%s1350] sm:$0x3f]
        %v1352 = vsel %vm538, %v1349, 0.0
        %1353 = vadd.xlane.f32.xlu0 %v1352
        %v1354 = vpop.xlane.xlu0 %1353
        %v1355 = vmul.f32 %v1354, %v542
        %v1356 = vsub.f32 %v1349, %v1355
        %v1357 = vmul.f32 %v1356, %v1356
        %v1358 = vsel %vm538, %v1357, 0.0
        %1359 = vadd.xlane.f32.xlu0 %v1358
        %v1360 = vpop.xlane.xlu0 %1359
        %v1361 = vmul.f32 %v1360, %v542
        %v1362 = vadd.f32 %v1361, 1e-06
        %v1363 = vrsqrt.pop %v1362
        %v1364 = vmul.f32 %v1356, %v1363
        %v1365 = vlaneseq
        %v1366 = vshrl.u32 %v1365, 7
        %v1367 = vsub.s32 0, %v1366
        %v1368 = vrot.slane %v1351, %v1367
        %v1369 = vmul.f32 %v1364, %v1368
        %v1370 = vlaneseq
        %v1371 = vshrl.u32 %v1370, 7
        %v1372 = vsub.s32 1, %v1371
        %v1373 = vrot.slane %v1351, %v1372
        %v1374 = vadd.f32 %v1369, %v1373
        %v1375 = vpack.c.bf16 %v1374, %v1374
        %s1376 = scalar_lea.vmem %s3, 16
        %v1377 = vld [vmem:[%s1376] sm:$0xf]
        %v1378 = vld [vmem:[%s1376 + $0x4] sm:$0xf]
        %v1379 = vld [vmem:[%s1376 + $0x8] sm:$0xf]
        %v1380 = vld [vmem:[%s1376 + $0xc] sm:$0xf]
        %s1381 = scalar_lea.vmem %s7, 1
        %v1382 = vld [vmem:[%s1381] sm:$0x1]
        %v1384 = vlaneseq
        %v1385 = vshrl.u32 %v1384, 7
        %v1386 = vsub.s32 0, %v1385
        %v1387 = vrot.slane %v1382, %v1386
        %v1393 = vunpack.c.l.b16 %v1377
        %v1394 = vunpack.c.l.b16 %v1378
        %v1395 = vunpack.c.l.b16 %v1379
        %v1396 = vunpack.c.l.b16 %v1380
        %v1397 = vpack.c.b16 %v1394, %v1393
        %v1398 = vpack.c.b16 %v1396, %v1395
        %v1402 = vsel %vm538, %v1375, 0
        %1404 = vmatprep.subr.bf16.mxu0 0
        %1405 = vmatpush1.bf16.msra.mxu0 0
        %1406 = vmatprep.subr.bf16.mxu0 0
        %1407 = vmatpush1.bf16.msra.mxu0 0
        %1408 = vmatprep.subr.bf16.mxu0 0
        %1409 = vmatpush1.bf16.msra.mxu0 0
        %1410 = vmatprep.subr.bf16.mxu0 0
        %1411 = vmatpush1.bf16.msra.mxu0 0
        %1412 = vmatprep.subr.bf16.mxu0 0
        %1413 = vmatpush1.bf16.msra.mxu0 0
        %1414 = vmatprep.subr.bf16.mxu0 0
        %1415 = vmatpush1.bf16.msra.mxu0 0
        %1416 = vmatprep.subr.bf16.mxu0 0
        %1417 = vmatpush1.bf16.msra.mxu0 %v1398
        %1418 = vmatprep.subr.bf16.mxu0 0
        %1419 = vmatpush1.bf16.msra.mxu0 %v1397
        %1420 = vmatprep.subr.bf16.mxu0 0
        %1421 = vmatpush2.bf16.msra.mxu0 0
        %1422 = vmatprep.subr.bf16.mxu0 0
        %1423 = vmatpush2.bf16.msra.mxu0 0
        %1424 = vmatprep.subr.bf16.mxu0 0
        %1425 = vmatpush2.bf16.msra.mxu0 0
        %1426 = vmatprep.subr.bf16.mxu0 0
        %1427 = vmatpush2.bf16.msra.mxu0 0
        %1428 = vmatprep.subr.bf16.mxu0 0
        %1429 = vmatpush2.bf16.msra.mxu0 0
        %1430 = vmatprep.subr.bf16.mxu0 0
        %1431 = vmatpush2.bf16.msra.mxu0 0
        %1432 = vmatprep.subr.bf16.mxu0 0
        %1433 = vmatpush2.bf16.msra.mxu0 0
        %1434 = vmatprep.subr.bf16.mxu0 0
        %1435 = vmatpush2.bf16.msra.mxu0 0
        %1436 = vmatprep.mubr.bf16.mxu0 0
        %1437 = vmatmul.mubr.bf16.gmra.mxu0 %v1402
        %v1438 = vpop.f32.mrf.mxu0
        %v1439 = vadd.f32 %v1387, %v1438
        %v1440 = vpop.f32.mrf.mxu0
        %v1441 = vpop.f32.mrf.mxu0
        %v1442 = vpop.f32.mrf.mxu0
        %1443 = vdwg.mxu0
        %v1444 = vmul.f32 %v1439, 0.35355338
        %v1445 = vpack.c.bf16 %v1444, %v1444
        %v1446 = vpack.c.bf16 %v1439, %v1439
        %1448 = vrot.lane.b32.xlu0 %v1446, 96
        %v1449 = vpop.permute.xlu0 %1448
        %v1451 = vsel %vm636, %v1445, 0
        %v1454 = vsel %vm636, %v1449, 0
        %1456 = vmatprep.subr.bf16.mxu0 0
        %1457 = vmatpush1.bf16.xpose.msra.mxu0 0
        %1458 = vmatprep.subr.bf16.mxu0 0
        %1459 = vmatpush1.bf16.xpose.msra.mxu0 0
        %1460 = vmatprep.subr.bf16.mxu0 0
        %1461 = vmatpush1.bf16.xpose.msra.mxu0 0
        %1462 = vmatprep.subr.bf16.mxu0 0
        %1463 = vmatpush1.bf16.xpose.msra.mxu0 0
        %1464 = vmatprep.subr.bf16.mxu0 0
        %1465 = vmatpush1.bf16.xpose.msra.mxu0 0
        %1466 = vmatprep.subr.bf16.mxu0 0
        %1467 = vmatpush1.bf16.xpose.msra.mxu0 0
        %1468 = vmatprep.subr.bf16.mxu0 0
        %1469 = vmatpush1.bf16.xpose.msra.mxu0 0
        %1470 = vmatprep.subr.bf16.mxu0 0
        %1471 = vmatpush1.bf16.xpose.msra.mxu0 %v1454
        %1472 = vmatprep.subr.bf16.mxu0 0
        %1473 = vmatpush2.bf16.xpose.msra.mxu0 0
        %1474 = vmatprep.subr.bf16.mxu0 0
        %1475 = vmatpush2.bf16.xpose.msra.mxu0 0
        %1476 = vmatprep.subr.bf16.mxu0 0
        %1477 = vmatpush2.bf16.xpose.msra.mxu0 0
        %1478 = vmatprep.subr.bf16.mxu0 0
        %1479 = vmatpush2.bf16.xpose.msra.mxu0 0
        %1480 = vmatprep.subr.bf16.mxu0 0
        %1481 = vmatpush2.bf16.xpose.msra.mxu0 0
        %1482 = vmatprep.subr.bf16.mxu0 0
        %1483 = vmatpush2.bf16.xpose.msra.mxu0 0
        %1484 = vmatprep.subr.bf16.mxu0 0
        %1485 = vmatpush2.bf16.xpose.msra.mxu0 0
        %1486 = vmatprep.subr.bf16.mxu0 0
        %1487 = vmatpush2.bf16.xpose.msra.mxu0 0
        %1488 = vmatprep.mubr.bf16.mxu0 0
        %1489 = vmatmul.mubr.bf16.gmra.mxu0 %v1451
        %v1490 = vpop.f32.mrf.mxu0
        %v1491 = vadd.f32 %v536, %v1490
        %v1492 = vpop.f32.mrf.mxu0
        %v1493 = vpop.f32.mrf.mxu0
        %v1494 = vpop.f32.mrf.mxu0
        %1495 = vdwg.mxu0
        %v1496 = vmul.f32 %v1491, 1.442695
        %v1497 = vpow.pop %v1496
        %v1498 = vsel %vm636, %v1497, 0.0
        %1499 = vadd.xlane.f32.xlu0 %v1498
        %v1500 = vpop.xlane.xlu0 %1499
        %v1501 = vrcp.pop %v1500
        %v1502 = vmul.f32 %v1497, %v1501
        %v1503 = vpack.c.bf16 %v1502, %v1502
        %1504 = vrot.lane.b32.xlu0 %v1446, 64
        %v1505 = vpop.permute.xlu0 %1504
        %v1507 = vsel %vm636, %v1503, 0
        %v1510 = vsel %vm696, %v1505, 0
        %1512 = vmatprep.subr.bf16.mxu0 0
        %1513 = vmatpush1.bf16.msra.mxu0 0
        %1514 = vmatprep.subr.bf16.mxu0 0
        %1515 = vmatpush1.bf16.msra.mxu0 0
        %1516 = vmatprep.subr.bf16.mxu0 0
        %1517 = vmatpush1.bf16.msra.mxu0 0
        %1518 = vmatprep.subr.bf16.mxu0 0
        %1519 = vmatpush1.bf16.msra.mxu0 0
        %1520 = vmatprep.subr.bf16.mxu0 0
        %1521 = vmatpush1.bf16.msra.mxu0 0
        %1522 = vmatprep.subr.bf16.mxu0 0
        %1523 = vmatpush1.bf16.msra.mxu0 0
        %1524 = vmatprep.subr.bf16.mxu0 0
        %1525 = vmatpush1.bf16.msra.mxu0 0
        %1526 = vmatprep.subr.bf16.mxu0 0
        %1527 = vmatpush1.bf16.msra.mxu0 %v1510
        %1528 = vmatprep.subr.bf16.mxu0 0
        %1529 = vmatpush2.bf16.msra.mxu0 0
        %1530 = vmatprep.subr.bf16.mxu0 0
        %1531 = vmatpush2.bf16.msra.mxu0 0
        %1532 = vmatprep.subr.bf16.mxu0 0
        %1533 = vmatpush2.bf16.msra.mxu0 0
        %1534 = vmatprep.subr.bf16.mxu0 0
        %1535 = vmatpush2.bf16.msra.mxu0 0
        %1536 = vmatprep.subr.bf16.mxu0 0
        %1537 = vmatpush2.bf16.msra.mxu0 0
        %1538 = vmatprep.subr.bf16.mxu0 0
        %1539 = vmatpush2.bf16.msra.mxu0 0
        %1540 = vmatprep.subr.bf16.mxu0 0
        %1541 = vmatpush2.bf16.msra.mxu0 0
        %1542 = vmatprep.subr.bf16.mxu0 0
        %1543 = vmatpush2.bf16.msra.mxu0 0
        %1544 = vmatprep.mubr.bf16.mxu0 0
        %1545 = vmatmul.mubr.bf16.gmra.mxu0 %v1507
        %v1546 = vpop.f32.mrf.mxu0
        %v1547 = vadd.f32 0.0, %v1546
        %v1548 = vpop.f32.mrf.mxu0
        %v1549 = vpop.f32.mrf.mxu0
        %v1550 = vpop.f32.mrf.mxu0
        %1551 = vdwg.mxu0
        %1553 = vrot.lane.b32.xlu0 %v1445, 120
        %v1554 = vpop.permute.xlu0 %1553
        %1555 = vrot.lane.b32.xlu0 %v1446, 88
        %v1556 = vpop.permute.xlu0 %1555
        %v1558 = vsel %vm636, %v1554, 0
        %v1561 = vsel %vm636, %v1556, 0
        %1563 = vmatprep.subr.bf16.mxu0 0
        %1564 = vmatpush1.bf16.xpose.msra.mxu0 0
        %1565 = vmatprep.subr.bf16.mxu0 0
        %1566 = vmatpush1.bf16.xpose.msra.mxu0 0
        %1567 = vmatprep.subr.bf16.mxu0 0
        %1568 = vmatpush1.bf16.xpose.msra.mxu0 0
        %1569 = vmatprep.subr.bf16.mxu0 0
        %1570 = vmatpush1.bf16.xpose.msra.mxu0 0
        %1571 = vmatprep.subr.bf16.mxu0 0
        %1572 = vmatpush1.bf16.xpose.msra.mxu0 0
        %1573 = vmatprep.subr.bf16.mxu0 0
        %1574 = vmatpush1.bf16.xpose.msra.mxu0 0
        %1575 = vmatprep.subr.bf16.mxu0 0
        %1576 = vmatpush1.bf16.xpose.msra.mxu0 0
        %1577 = vmatprep.subr.bf16.mxu0 0
        %1578 = vmatpush1.bf16.xpose.msra.mxu0 %v1561
        %1579 = vmatprep.subr.bf16.mxu0 0
        %1580 = vmatpush2.bf16.xpose.msra.mxu0 0
        %1581 = vmatprep.subr.bf16.mxu0 0
        %1582 = vmatpush2.bf16.xpose.msra.mxu0 0
        %1583 = vmatprep.subr.bf16.mxu0 0
        %1584 = vmatpush2.bf16.xpose.msra.mxu0 0
        %1585 = vmatprep.subr.bf16.mxu0 0
        %1586 = vmatpush2.bf16.xpose.msra.mxu0 0
        %1587 = vmatprep.subr.bf16.mxu0 0
        %1588 = vmatpush2.bf16.xpose.msra.mxu0 0
        %1589 = vmatprep.subr.bf16.mxu0 0
        %1590 = vmatpush2.bf16.xpose.msra.mxu0 0
        %1591 = vmatprep.subr.bf16.mxu0 0
        %1592 = vmatpush2.bf16.xpose.msra.mxu0 0
        %1593 = vmatprep.subr.bf16.mxu0 0
        %1594 = vmatpush2.bf16.xpose.msra.mxu0 0
        %1595 = vmatprep.mubr.bf16.mxu0 0
        %1596 = vmatmul.mubr.bf16.gmra.mxu0 %v1558
        %v1597 = vpop.f32.mrf.mxu0
        %v1598 = vadd.f32 %v536, %v1597
        %v1599 = vpop.f32.mrf.mxu0
        %v1600 = vpop.f32.mrf.mxu0
        %v1601 = vpop.f32.mrf.mxu0
        %1602 = vdwg.mxu0
        %v1603 = vmul.f32 %v1598, 1.442695
        %v1604 = vpow.pop %v1603
        %v1605 = vsel %vm636, %v1604, 0.0
        %1606 = vadd.xlane.f32.xlu0 %v1605
        %v1607 = vpop.xlane.xlu0 %1606
        %v1608 = vrcp.pop %v1607
        %v1609 = vmul.f32 %v1604, %v1608
        %v1610 = vpack.c.bf16 %v1609, %v1609
        %1611 = vrot.lane.b32.xlu0 %v1446, 56
        %v1612 = vpop.permute.xlu0 %1611
        %v1614 = vsel %vm636, %v1610, 0
        %v1617 = vsel %vm696, %v1612, 0
        %1619 = vmatprep.subr.bf16.mxu0 0
        %1620 = vmatpush1.bf16.msra.mxu0 0
        %1621 = vmatprep.subr.bf16.mxu0 0
        %1622 = vmatpush1.bf16.msra.mxu0 0
        %1623 = vmatprep.subr.bf16.mxu0 0
        %1624 = vmatpush1.bf16.msra.mxu0 0
        %1625 = vmatprep.subr.bf16.mxu0 0
        %1626 = vmatpush1.bf16.msra.mxu0 0
        %1627 = vmatprep.subr.bf16.mxu0 0
        %1628 = vmatpush1.bf16.msra.mxu0 0
        %1629 = vmatprep.subr.bf16.mxu0 0
        %1630 = vmatpush1.bf16.msra.mxu0 0
        %1631 = vmatprep.subr.bf16.mxu0 0
        %1632 = vmatpush1.bf16.msra.mxu0 0
        %1633 = vmatprep.subr.bf16.mxu0 0
        %1634 = vmatpush1.bf16.msra.mxu0 %v1617
        %1635 = vmatprep.subr.bf16.mxu0 0
        %1636 = vmatpush2.bf16.msra.mxu0 0
        %1637 = vmatprep.subr.bf16.mxu0 0
        %1638 = vmatpush2.bf16.msra.mxu0 0
        %1639 = vmatprep.subr.bf16.mxu0 0
        %1640 = vmatpush2.bf16.msra.mxu0 0
        %1641 = vmatprep.subr.bf16.mxu0 0
        %1642 = vmatpush2.bf16.msra.mxu0 0
        %1643 = vmatprep.subr.bf16.mxu0 0
        %1644 = vmatpush2.bf16.msra.mxu0 0
        %1645 = vmatprep.subr.bf16.mxu0 0
        %1646 = vmatpush2.bf16.msra.mxu0 0
        %1647 = vmatprep.subr.bf16.mxu0 0
        %1648 = vmatpush2.bf16.msra.mxu0 0
        %1649 = vmatprep.subr.bf16.mxu0 0
        %1650 = vmatpush2.bf16.msra.mxu0 0
        %1651 = vmatprep.mubr.bf16.mxu0 0
        %1652 = vmatmul.mubr.bf16.gmra.mxu0 %v1614
        %v1653 = vpop.f32.mrf.mxu0
        %v1654 = vadd.f32 0.0, %v1653
        %v1655 = vpop.f32.mrf.mxu0
        %v1656 = vpop.f32.mrf.mxu0
        %v1657 = vpop.f32.mrf.mxu0
        %1658 = vdwg.mxu0
        %1659 = vrot.lane.b32.xlu0 %v1445, 112
        %v1660 = vpop.permute.xlu0 %1659
        %1661 = vrot.lane.b32.xlu0 %v1446, 80
        %v1662 = vpop.permute.xlu0 %1661
        %v1664 = vsel %vm636, %v1660, 0
        %v1667 = vsel %vm636, %v1662, 0
        %1669 = vmatprep.subr.bf16.mxu0 0
        %1670 = vmatpush1.bf16.xpose.msra.mxu0 0
        %1671 = vmatprep.subr.bf16.mxu0 0
        %1672 = vmatpush1.bf16.xpose.msra.mxu0 0
        %1673 = vmatprep.subr.bf16.mxu0 0
        %1674 = vmatpush1.bf16.xpose.msra.mxu0 0
        %1675 = vmatprep.subr.bf16.mxu0 0
        %1676 = vmatpush1.bf16.xpose.msra.mxu0 0
        %1677 = vmatprep.subr.bf16.mxu0 0
        %1678 = vmatpush1.bf16.xpose.msra.mxu0 0
        %1679 = vmatprep.subr.bf16.mxu0 0
        %1680 = vmatpush1.bf16.xpose.msra.mxu0 0
        %1681 = vmatprep.subr.bf16.mxu0 0
        %1682 = vmatpush1.bf16.xpose.msra.mxu0 0
        %1683 = vmatprep.subr.bf16.mxu0 0
        %1684 = vmatpush1.bf16.xpose.msra.mxu0 %v1667
        %1685 = vmatprep.subr.bf16.mxu0 0
        %1686 = vmatpush2.bf16.xpose.msra.mxu0 0
        %1687 = vmatprep.subr.bf16.mxu0 0
        %1688 = vmatpush2.bf16.xpose.msra.mxu0 0
        %1689 = vmatprep.subr.bf16.mxu0 0
        %1690 = vmatpush2.bf16.xpose.msra.mxu0 0
        %1691 = vmatprep.subr.bf16.mxu0 0
        %1692 = vmatpush2.bf16.xpose.msra.mxu0 0
        %1693 = vmatprep.subr.bf16.mxu0 0
        %1694 = vmatpush2.bf16.xpose.msra.mxu0 0
        %1695 = vmatprep.subr.bf16.mxu0 0
        %1696 = vmatpush2.bf16.xpose.msra.mxu0 0
        %1697 = vmatprep.subr.bf16.mxu0 0
        %1698 = vmatpush2.bf16.xpose.msra.mxu0 0
        %1699 = vmatprep.subr.bf16.mxu0 0
        %1700 = vmatpush2.bf16.xpose.msra.mxu0 0
        %1701 = vmatprep.mubr.bf16.mxu0 0
        %1702 = vmatmul.mubr.bf16.gmra.mxu0 %v1664
        %v1703 = vpop.f32.mrf.mxu0
        %v1704 = vadd.f32 %v536, %v1703
        %v1705 = vpop.f32.mrf.mxu0
        %v1706 = vpop.f32.mrf.mxu0
        %v1707 = vpop.f32.mrf.mxu0
        %1708 = vdwg.mxu0
        %v1709 = vmul.f32 %v1704, 1.442695
        %v1710 = vpow.pop %v1709
        %v1711 = vsel %vm636, %v1710, 0.0
        %1712 = vadd.xlane.f32.xlu0 %v1711
        %v1713 = vpop.xlane.xlu0 %1712
        %v1714 = vrcp.pop %v1713
        %v1715 = vmul.f32 %v1710, %v1714
        %v1716 = vpack.c.bf16 %v1715, %v1715
        %1717 = vrot.lane.b32.xlu0 %v1446, 48
        %v1718 = vpop.permute.xlu0 %1717
        %v1720 = vsel %vm636, %v1716, 0
        %v1723 = vsel %vm696, %v1718, 0
        %1725 = vmatprep.subr.bf16.mxu0 0
        %1726 = vmatpush1.bf16.msra.mxu0 0
        %1727 = vmatprep.subr.bf16.mxu0 0
        %1728 = vmatpush1.bf16.msra.mxu0 0
        %1729 = vmatprep.subr.bf16.mxu0 0
        %1730 = vmatpush1.bf16.msra.mxu0 0
        %1731 = vmatprep.subr.bf16.mxu0 0
        %1732 = vmatpush1.bf16.msra.mxu0 0
        %1733 = vmatprep.subr.bf16.mxu0 0
        %1734 = vmatpush1.bf16.msra.mxu0 0
        %1735 = vmatprep.subr.bf16.mxu0 0
        %1736 = vmatpush1.bf16.msra.mxu0 0
        %1737 = vmatprep.subr.bf16.mxu0 0
        %1738 = vmatpush1.bf16.msra.mxu0 0
        %1739 = vmatprep.subr.bf16.mxu0 0
        %1740 = vmatpush1.bf16.msra.mxu0 %v1723
        %1741 = vmatprep.subr.bf16.mxu0 0
        %1742 = vmatpush2.bf16.msra.mxu0 0
        %1743 = vmatprep.subr.bf16.mxu0 0
        %1744 = vmatpush2.bf16.msra.mxu0 0
        %1745 = vmatprep.subr.bf16.mxu0 0
        %1746 = vmatpush2.bf16.msra.mxu0 0
        %1747 = vmatprep.subr.bf16.mxu0 0
        %1748 = vmatpush2.bf16.msra.mxu0 0
        %1749 = vmatprep.subr.bf16.mxu0 0
        %1750 = vmatpush2.bf16.msra.mxu0 0
        %1751 = vmatprep.subr.bf16.mxu0 0
        %1752 = vmatpush2.bf16.msra.mxu0 0
        %1753 = vmatprep.subr.bf16.mxu0 0
        %1754 = vmatpush2.bf16.msra.mxu0 0
        %1755 = vmatprep.subr.bf16.mxu0 0
        %1756 = vmatpush2.bf16.msra.mxu0 0
        %1757 = vmatprep.mubr.bf16.mxu0 0
        %1758 = vmatmul.mubr.bf16.gmra.mxu0 %v1720
        %v1759 = vpop.f32.mrf.mxu0
        %v1760 = vadd.f32 0.0, %v1759
        %v1761 = vpop.f32.mrf.mxu0
        %v1762 = vpop.f32.mrf.mxu0
        %v1763 = vpop.f32.mrf.mxu0
        %1764 = vdwg.mxu0
        %1765 = vrot.lane.b32.xlu0 %v1445, 104
        %v1766 = vpop.permute.xlu0 %1765
        %1767 = vrot.lane.b32.xlu0 %v1446, 72
        %v1768 = vpop.permute.xlu0 %1767
        %v1770 = vsel %vm636, %v1766, 0
        %v1773 = vsel %vm636, %v1768, 0
        %1775 = vmatprep.subr.bf16.mxu0 0
        %1776 = vmatpush1.bf16.xpose.msra.mxu0 0
        %1777 = vmatprep.subr.bf16.mxu0 0
        %1778 = vmatpush1.bf16.xpose.msra.mxu0 0
        %1779 = vmatprep.subr.bf16.mxu0 0
        %1780 = vmatpush1.bf16.xpose.msra.mxu0 0
        %1781 = vmatprep.subr.bf16.mxu0 0
        %1782 = vmatpush1.bf16.xpose.msra.mxu0 0
        %1783 = vmatprep.subr.bf16.mxu0 0
        %1784 = vmatpush1.bf16.xpose.msra.mxu0 0
        %1785 = vmatprep.subr.bf16.mxu0 0
        %1786 = vmatpush1.bf16.xpose.msra.mxu0 0
        %1787 = vmatprep.subr.bf16.mxu0 0
        %1788 = vmatpush1.bf16.xpose.msra.mxu0 0
        %1789 = vmatprep.subr.bf16.mxu0 0
        %1790 = vmatpush1.bf16.xpose.msra.mxu0 %v1773
        %1791 = vmatprep.subr.bf16.mxu0 0
        %1792 = vmatpush2.bf16.xpose.msra.mxu0 0
        %1793 = vmatprep.subr.bf16.mxu0 0
        %1794 = vmatpush2.bf16.xpose.msra.mxu0 0
        %1795 = vmatprep.subr.bf16.mxu0 0
        %1796 = vmatpush2.bf16.xpose.msra.mxu0 0
        %1797 = vmatprep.subr.bf16.mxu0 0
        %1798 = vmatpush2.bf16.xpose.msra.mxu0 0
        %1799 = vmatprep.subr.bf16.mxu0 0
        %1800 = vmatpush2.bf16.xpose.msra.mxu0 0
        %1801 = vmatprep.subr.bf16.mxu0 0
        %1802 = vmatpush2.bf16.xpose.msra.mxu0 0
        %1803 = vmatprep.subr.bf16.mxu0 0
        %1804 = vmatpush2.bf16.xpose.msra.mxu0 0
        %1805 = vmatprep.subr.bf16.mxu0 0
        %1806 = vmatpush2.bf16.xpose.msra.mxu0 0
        %1807 = vmatprep.mubr.bf16.mxu0 0
        %1808 = vmatmul.mubr.bf16.gmra.mxu0 %v1770
        %v1809 = vpop.f32.mrf.mxu0
        %v1810 = vadd.f32 %v536, %v1809
        %v1811 = vpop.f32.mrf.mxu0
        %v1812 = vpop.f32.mrf.mxu0
        %v1813 = vpop.f32.mrf.mxu0
        %1814 = vdwg.mxu0
        %v1815 = vmul.f32 %v1810, 1.442695
        %v1816 = vpow.pop %v1815
        %v1817 = vsel %vm636, %v1816, 0.0
        %1818 = vadd.xlane.f32.xlu0 %v1817
        %v1819 = vpop.xlane.xlu0 %1818
        %v1820 = vrcp.pop %v1819
        %v1821 = vmul.f32 %v1816, %v1820
        %v1822 = vpack.c.bf16 %v1821, %v1821
        %1823 = vrot.lane.b32.xlu0 %v1446, 40
        %v1824 = vpop.permute.xlu0 %1823
        %v1826 = vsel %vm636, %v1822, 0
        %v1829 = vsel %vm696, %v1824, 0
        %1831 = vmatprep.subr.bf16.mxu0 0
        %1832 = vmatpush1.bf16.msra.mxu0 0
        %1833 = vmatprep.subr.bf16.mxu0 0
        %1834 = vmatpush1.bf16.msra.mxu0 0
        %1835 = vmatprep.subr.bf16.mxu0 0
        %1836 = vmatpush1.bf16.msra.mxu0 0
        %1837 = vmatprep.subr.bf16.mxu0 0
        %1838 = vmatpush1.bf16.msra.mxu0 0
        %1839 = vmatprep.subr.bf16.mxu0 0
        %1840 = vmatpush1.bf16.msra.mxu0 0
        %1841 = vmatprep.subr.bf16.mxu0 0
        %1842 = vmatpush1.bf16.msra.mxu0 0
        %1843 = vmatprep.subr.bf16.mxu0 0
        %1844 = vmatpush1.bf16.msra.mxu0 0
        %1845 = vmatprep.subr.bf16.mxu0 0
        %1846 = vmatpush1.bf16.msra.mxu0 %v1829
        %1847 = vmatprep.subr.bf16.mxu0 0
        %1848 = vmatpush2.bf16.msra.mxu0 0
        %1849 = vmatprep.subr.bf16.mxu0 0
        %1850 = vmatpush2.bf16.msra.mxu0 0
        %1851 = vmatprep.subr.bf16.mxu0 0
        %1852 = vmatpush2.bf16.msra.mxu0 0
        %1853 = vmatprep.subr.bf16.mxu0 0
        %1854 = vmatpush2.bf16.msra.mxu0 0
        %1855 = vmatprep.subr.bf16.mxu0 0
        %1856 = vmatpush2.bf16.msra.mxu0 0
        %1857 = vmatprep.subr.bf16.mxu0 0
        %1858 = vmatpush2.bf16.msra.mxu0 0
        %1859 = vmatprep.subr.bf16.mxu0 0
        %1860 = vmatpush2.bf16.msra.mxu0 0
        %1861 = vmatprep.subr.bf16.mxu0 0
        %1862 = vmatpush2.bf16.msra.mxu0 0
        %1863 = vmatprep.mubr.bf16.mxu0 0
        %1864 = vmatmul.mubr.bf16.gmra.mxu0 %v1826
        %v1865 = vpop.f32.mrf.mxu0
        %v1866 = vadd.f32 0.0, %v1865
        %v1867 = vpop.f32.mrf.mxu0
        %v1868 = vpop.f32.mrf.mxu0
        %v1869 = vpop.f32.mrf.mxu0
        %1870 = vdwg.mxu0
        %1872 = vrot.lane.b32.xlu0 %v1654, 8
        %v1873 = vpop.permute.xlu0 %1872
        %1876 = vrot.lane.b32.xlu0 %v1760, 16
        %v1877 = vpop.permute.xlu0 %1876
        %1880 = vrot.lane.b32.xlu0 %v1866, 24
        %v1881 = vpop.permute.xlu0 %1880
        %v1883 = vsel %vm636, %v1547, %v1873
        %v1884 = vsel %vm1072, %v1883, %v1877
        %v1885 = vsel %vm1074, %v1884, %v1881
        %v1886 = vpack.c.bf16 %v1885, %v1885
        %s1887 = scalar_lea.vmem %s4, 16
        %v1888 = vld [vmem:[%s1887] sm:$0xf]
        %v1889 = vld [vmem:[%s1887 + $0x4] sm:$0xf]
        %v1890 = vld [vmem:[%s1887 + $0x8] sm:$0xf]
        %v1891 = vld [vmem:[%s1887 + $0xc] sm:$0xf]
        %v1892 = vlaneseq
        %v1893 = vshrl.u32 %v1892, 7
        %v1894 = vsub.s32 2, %v1893
        %v1895 = vrot.slane %v1351, %v1894
        %v1900 = vunpack.c.l.b16 %v1888
        %v1901 = vunpack.c.l.b16 %v1889
        %v1902 = vunpack.c.l.b16 %v1890
        %v1903 = vunpack.c.l.b16 %v1891
        %v1904 = vpack.c.b16 %v1901, %v1900
        %v1905 = vpack.c.b16 %v1903, %v1902
        %v1909 = vsel %vm538, %v1886, 0
        %1911 = vmatprep.subr.bf16.mxu0 0
        %1912 = vmatpush1.bf16.msra.mxu0 0
        %1913 = vmatprep.subr.bf16.mxu0 0
        %1914 = vmatpush1.bf16.msra.mxu0 0
        %1915 = vmatprep.subr.bf16.mxu0 0
        %1916 = vmatpush1.bf16.msra.mxu0 0
        %1917 = vmatprep.subr.bf16.mxu0 0
        %1918 = vmatpush1.bf16.msra.mxu0 0
        %1919 = vmatprep.subr.bf16.mxu0 0
        %1920 = vmatpush1.bf16.msra.mxu0 0
        %1921 = vmatprep.subr.bf16.mxu0 0
        %1922 = vmatpush1.bf16.msra.mxu0 0
        %1923 = vmatprep.subr.bf16.mxu0 0
        %1924 = vmatpush1.bf16.msra.mxu0 %v1905
        %1925 = vmatprep.subr.bf16.mxu0 0
        %1926 = vmatpush1.bf16.msra.mxu0 %v1904
        %1927 = vmatprep.subr.bf16.mxu0 0
        %1928 = vmatpush2.bf16.msra.mxu0 0
        %1929 = vmatprep.subr.bf16.mxu0 0
        %1930 = vmatpush2.bf16.msra.mxu0 0
        %1931 = vmatprep.subr.bf16.mxu0 0
        %1932 = vmatpush2.bf16.msra.mxu0 0
        %1933 = vmatprep.subr.bf16.mxu0 0
        %1934 = vmatpush2.bf16.msra.mxu0 0
        %1935 = vmatprep.subr.bf16.mxu0 0
        %1936 = vmatpush2.bf16.msra.mxu0 0
        %1937 = vmatprep.subr.bf16.mxu0 0
        %1938 = vmatpush2.bf16.msra.mxu0 0
        %1939 = vmatprep.subr.bf16.mxu0 0
        %1940 = vmatpush2.bf16.msra.mxu0 0
        %1941 = vmatprep.subr.bf16.mxu0 0
        %1942 = vmatpush2.bf16.msra.mxu0 0
        %1943 = vmatprep.mubr.bf16.mxu0 0
        %1944 = vmatmul.mubr.bf16.gmra.mxu0 %v1909
        %v1945 = vpop.f32.mrf.mxu0
        %v1946 = vadd.f32 %v1895, %v1945
        %v1947 = vpop.f32.mrf.mxu0
        %v1948 = vpop.f32.mrf.mxu0
        %v1949 = vpop.f32.mrf.mxu0
        %1950 = vdwg.mxu0
        %v1951 = vadd.f32 %v1349, %v1946
        %v1952 = vsel %vm538, %v1951, 0.0
        %1953 = vadd.xlane.f32.xlu0 %v1952
        %v1954 = vpop.xlane.xlu0 %1953
        %v1955 = vmul.f32 %v1954, %v542
        %v1956 = vsub.f32 %v1951, %v1955
        %v1957 = vmul.f32 %v1956, %v1956
        %v1958 = vsel %vm538, %v1957, 0.0
        %1959 = vadd.xlane.f32.xlu0 %v1958
        %v1960 = vpop.xlane.xlu0 %1959
        %v1961 = vmul.f32 %v1960, %v542
        %v1962 = vadd.f32 %v1961, 1e-06
        %v1963 = vrsqrt.pop %v1962
        %v1964 = vmul.f32 %v1956, %v1963
        %v1965 = vlaneseq
        %v1966 = vshrl.u32 %v1965, 7
        %v1967 = vsub.s32 3, %v1966
        %v1968 = vrot.slane %v1351, %v1967
        %v1969 = vmul.f32 %v1964, %v1968
        %v1970 = vlaneseq
        %v1971 = vshrl.u32 %v1970, 7
        %v1972 = vsub.s32 4, %v1971
        %v1973 = vrot.slane %v1351, %v1972
        %v1974 = vadd.f32 %v1969, %v1973
        %v1975 = vpack.c.bf16 %v1974, %v1974
        %s1976 = scalar_lea.vmem %s5, 16
        %v1977 = vld [vmem:[%s1976] sm:$0xf]
        %v1978 = vld [vmem:[%s1976 + $0x4] sm:$0xf]
        %v1979 = vld [vmem:[%s1976 + $0x8] sm:$0xf]
        %v1980 = vld [vmem:[%s1976 + $0xc] sm:$0xf]
        %s1981 = scalar_lea.vmem %s8, 1
        %v1982 = vld [vmem:[%s1981] sm:$0x1]
        %v1984 = vlaneseq
        %v1985 = vshrl.u32 %v1984, 7
        %v1986 = vsub.s32 0, %v1985
        %v1987 = vrot.slane %v1982, %v1986
        %v1993 = vunpack.c.l.b16 %v1977
        %v1994 = vunpack.c.l.b16 %v1978
        %v1995 = vunpack.c.l.b16 %v1979
        %v1996 = vunpack.c.l.b16 %v1980
        %v1997 = vpack.c.b16 %v1994, %v1993
        %v1998 = vpack.c.b16 %v1996, %v1995
        %v2002 = vsel %vm538, %v1975, 0
        %2004 = vmatprep.subr.bf16.mxu0 0
        %2005 = vmatpush1.bf16.msra.mxu0 0
        %2006 = vmatprep.subr.bf16.mxu0 0
        %2007 = vmatpush1.bf16.msra.mxu0 0
        %2008 = vmatprep.subr.bf16.mxu0 0
        %2009 = vmatpush1.bf16.msra.mxu0 0
        %2010 = vmatprep.subr.bf16.mxu0 0
        %2011 = vmatpush1.bf16.msra.mxu0 0
        %2012 = vmatprep.subr.bf16.mxu0 0
        %2013 = vmatpush1.bf16.msra.mxu0 0
        %2014 = vmatprep.subr.bf16.mxu0 0
        %2015 = vmatpush1.bf16.msra.mxu0 0
        %2016 = vmatprep.subr.bf16.mxu0 0
        %2017 = vmatpush1.bf16.msra.mxu0 %v1998
        %2018 = vmatprep.subr.bf16.mxu0 0
        %2019 = vmatpush1.bf16.msra.mxu0 %v1997
        %2020 = vmatprep.subr.bf16.mxu0 0
        %2021 = vmatpush2.bf16.msra.mxu0 0
        %2022 = vmatprep.subr.bf16.mxu0 0
        %2023 = vmatpush2.bf16.msra.mxu0 0
        %2024 = vmatprep.subr.bf16.mxu0 0
        %2025 = vmatpush2.bf16.msra.mxu0 0
        %2026 = vmatprep.subr.bf16.mxu0 0
        %2027 = vmatpush2.bf16.msra.mxu0 0
        %2028 = vmatprep.subr.bf16.mxu0 0
        %2029 = vmatpush2.bf16.msra.mxu0 0
        %2030 = vmatprep.subr.bf16.mxu0 0
        %2031 = vmatpush2.bf16.msra.mxu0 0
        %2032 = vmatprep.subr.bf16.mxu0 0
        %2033 = vmatpush2.bf16.msra.mxu0 0
        %2034 = vmatprep.subr.bf16.mxu0 0
        %2035 = vmatpush2.bf16.msra.mxu0 0
        %2036 = vmatprep.mubr.bf16.mxu0 0
        %2037 = vmatmul.mubr.bf16.gmra.mxu0 %v2002
        %v2038 = vpop.f32.mrf.mxu0
        %v2039 = vadd.f32 %v1987, %v2038
        %v2040 = vpop.f32.mrf.mxu0
        %v2041 = vpop.f32.mrf.mxu0
        %v2042 = vpop.f32.mrf.mxu0
        %2043 = vdwg.mxu0
        %v2044 = vmul.f32 %v2039, %v2039
        %v2045 = vmul.f32 %v2039, %v2044
        %v2046 = vmul.f32 %v2045, 0.044715
        %v2047 = vadd.f32 %v2039, %v2046
        %v2048 = vmul.f32 %v2047, 0.7978846
        %v2049 = vtanh.pop %v2048
        %v2050 = vadd.f32 %v2049, 1.0
        %v2051 = vmul.f32 %v2050, 0.5
        %v2052 = vmul.f32 %v2039, %v2051
        %v2053 = vpack.c.bf16 %v2052, %v2052
        %s2054 = scalar_lea.vmem %s6, 64
        %v2055 = vld [vmem:[%s2054] sm:$0xf]
        %v2056 = vld [vmem:[%s2054 + $0x4] sm:$0xf]
        %v2057 = vld [vmem:[%s2054 + $0x8] sm:$0xf]
        %v2058 = vld [vmem:[%s2054 + $0xc] sm:$0xf]
        %v2059 = vld [vmem:[%s2054 + $0x10] sm:$0xf]
        %v2060 = vld [vmem:[%s2054 + $0x14] sm:$0xf]
        %v2061 = vld [vmem:[%s2054 + $0x18] sm:$0xf]
        %v2062 = vld [vmem:[%s2054 + $0x1c] sm:$0xf]
        %v2063 = vld [vmem:[%s2054 + $0x20] sm:$0xf]
        %v2064 = vld [vmem:[%s2054 + $0x24] sm:$0xf]
        %v2065 = vld [vmem:[%s2054 + $0x28] sm:$0xf]
        %v2066 = vld [vmem:[%s2054 + $0x2c] sm:$0xf]
        %v2067 = vld [vmem:[%s2054 + $0x30] sm:$0xf]
        %v2068 = vld [vmem:[%s2054 + $0x34] sm:$0xf]
        %v2069 = vld [vmem:[%s2054 + $0x38] sm:$0xf]
        %v2070 = vld [vmem:[%s2054 + $0x3c] sm:$0xf]
        %v2071 = vlaneseq
        %v2072 = vshrl.u32 %v2071, 7
        %v2073 = vsub.s32 5, %v2072
        %v2074 = vrot.slane %v1351, %v2073
        %v2091 = vunpack.c.l.b16 %v2055
        %v2092 = vunpack.c.l.b16 %v2056
        %v2093 = vunpack.c.l.b16 %v2057
        %v2094 = vunpack.c.l.b16 %v2058
        %v2095 = vunpack.c.l.b16 %v2059
        %v2096 = vunpack.c.l.b16 %v2060
        %v2097 = vunpack.c.l.b16 %v2061
        %v2098 = vunpack.c.l.b16 %v2062
        %v2099 = vunpack.c.l.b16 %v2063
        %v2100 = vunpack.c.l.b16 %v2064
        %v2101 = vunpack.c.l.b16 %v2065
        %v2102 = vunpack.c.l.b16 %v2066
        %v2103 = vunpack.c.l.b16 %v2067
        %v2104 = vunpack.c.l.b16 %v2068
        %v2105 = vunpack.c.l.b16 %v2069
        %v2106 = vunpack.c.l.b16 %v2070
        %v2107 = vpack.c.b16 %v2092, %v2091
        %v2108 = vpack.c.b16 %v2094, %v2093
        %v2109 = vpack.c.b16 %v2096, %v2095
        %v2110 = vpack.c.b16 %v2098, %v2097
        %v2111 = vpack.c.b16 %v2100, %v2099
        %v2112 = vpack.c.b16 %v2102, %v2101
        %v2113 = vpack.c.b16 %v2104, %v2103
        %v2114 = vpack.c.b16 %v2106, %v2105
        %2123 = vmatprep.subr.bf16.mxu0 0
        %2124 = vmatpush1.bf16.msra.mxu0 %v2114
        %2125 = vmatprep.subr.bf16.mxu0 0
        %2126 = vmatpush1.bf16.msra.mxu0 %v2113
        %2127 = vmatprep.subr.bf16.mxu0 0
        %2128 = vmatpush1.bf16.msra.mxu0 %v2112
        %2129 = vmatprep.subr.bf16.mxu0 0
        %2130 = vmatpush1.bf16.msra.mxu0 %v2111
        %2131 = vmatprep.subr.bf16.mxu0 0
        %2132 = vmatpush1.bf16.msra.mxu0 %v2110
        %2133 = vmatprep.subr.bf16.mxu0 0
        %2134 = vmatpush1.bf16.msra.mxu0 %v2109
        %2135 = vmatprep.subr.bf16.mxu0 0
        %2136 = vmatpush1.bf16.msra.mxu0 %v2108
        %2137 = vmatprep.subr.bf16.mxu0 0
        %2138 = vmatpush1.bf16.msra.mxu0 %v2107
        %2139 = vmatprep.subr.bf16.mxu0 0
        %2140 = vmatpush2.bf16.msra.mxu0 0
        %2141 = vmatprep.subr.bf16.mxu0 0
        %2142 = vmatpush2.bf16.msra.mxu0 0
        %2143 = vmatprep.subr.bf16.mxu0 0
        %2144 = vmatpush2.bf16.msra.mxu0 0
        %2145 = vmatprep.subr.bf16.mxu0 0
        %2146 = vmatpush2.bf16.msra.mxu0 0
        %2147 = vmatprep.subr.bf16.mxu0 0
        %2148 = vmatpush2.bf16.msra.mxu0 0
        %2149 = vmatprep.subr.bf16.mxu0 0
        %2150 = vmatpush2.bf16.msra.mxu0 0
        %2151 = vmatprep.subr.bf16.mxu0 0
        %2152 = vmatpush2.bf16.msra.mxu0 0
        %2153 = vmatprep.subr.bf16.mxu0 0
        %2154 = vmatpush2.bf16.msra.mxu0 0
        %2155 = vmatprep.mubr.bf16.mxu0 0
        %2156 = vmatmul.mubr.bf16.gmra.mxu0 %v2053
        %v2157 = vpop.f32.mrf.mxu0
        %v2158 = vadd.f32 %v2074, %v2157
        %v2159 = vpop.f32.mrf.mxu0
        %v2160 = vpop.f32.mrf.mxu0
        %v2161 = vpop.f32.mrf.mxu0
        %2162 = vdwg.mxu0
        %v2163 = vadd.f32 %v1951, %v2158
        %v2164 = vld [vmem:[%s10] sm:$0x1]
        %v2165 = vld [vmem:[%s10 + $0x1] sm:$0x1]
        %vm2166 = vcmask 253952
        %v2167 = vsel %vm2166, %v2163, 0.0
        %2168 = vadd.xlane.f32.xlu0 %v2167
        %v2169 = vpop.xlane.xlu0 %2168
        %v2170 = vmul.f32 %v2169, %v542
        %v2171 = vsub.f32 %v2163, %v2170
        %v2172 = vmul.f32 %v2171, %v2171
        %v2173 = vsel %vm2166, %v2172, 0.0
        %2174 = vadd.xlane.f32.xlu0 %v2173
        %v2175 = vpop.xlane.xlu0 %2174
        %v2176 = vmul.f32 %v2175, %v542
        %v2177 = vadd.f32 %v2176, 1e-06
        %v2178 = vrsqrt.pop %v2177
        %v2179 = vmul.f32 %v2171, %v2178
        %v2180 = vmul.f32 %v2179, %v2164
        %v2181 = vadd.f32 %v2180, %v2165
        %2182 = vst.msk [vmem:[%s378] sm:$0x1] %vm2166, %v2181
        %s2183 = sand.u32 %s269, 1
        %s2184 = scalar_lea.sflag [#allocation3], %s2183
        %s2185 = sand.u32 %s269, 1
        %s2186 = scalar_lea.vmem [#allocation2], %s2185
        // Predicated region
        $region65: #{vision_encoder_forward.1} parent=63 // pred_check
          %p2187 = pneg %p279
        $region66: #{vision_encoder_forward.1} parent=63 // pred_check_branch
          %2189 = sbr.rel (%p2187) target = $region68
        $region67: #{vision_encoder_forward.1} parent=63 // pred_region
          %s2191 = ssub.s32 16, 16
          %2192 = vsyncadd %s2184, %s2191
          %s2193 = smul.addr %s25, 16
          %s2194 = scalar_lea.hbm %s11, %s2193
          %s2196 = sshll.u32 %s2186, 4
          %s2197 = int_to_ptr.vmem [resolvable:$true] %s2196
          %2199 = dma.vmem_to_hbm [thread:$0]  %s2197, 16, %s2194, %s2184
        $region68: #{vision_encoder_forward.1} parent=63 // pred_fallthru
          _
      $region64: #{vision_encoder_forward.1} parent=5 // pred_fallthru
        _
      %p2200 = scmp.le.s32.totalorder 2, %s20
      // Predicated region
      $region69: #{vision_encoder_forward.1} parent=5 // pred_check
        %p2201 = pneg %p2200
      $region70: #{vision_encoder_forward.1} parent=5 // pred_check_branch
        %2203 = sbr.rel (%p2201) target = $region72
      $region71: #{vision_encoder_forward.1} parent=5 // pred_region
        %s2204 = ssub.s32 %s20, 2
        // Predicated region
        $region73: #{vision_encoder_forward.1} parent=71 // pred_check
          %p2205 = pneg %p285
        $region74: #{vision_encoder_forward.1} parent=71 // pred_check_branch
          %2207 = sbr.rel (%p2205) target = $region76
        $region75: #{vision_encoder_forward.1} parent=71 // pred_region
          %s2208 = sand.u32 %s270, 1
          %s2209 = scalar_lea.sflag [#allocation3], %s2208
          %s2210 = sand.u32 %s270, 1
          %s2211 = scalar_lea.vmem [#allocation2], %s2210
          %2212 = dma.done %s2209, 16
        $region76: #{vision_encoder_forward.1} parent=71 // pred_fallthru
          _
      $region72: #{vision_encoder_forward.1} parent=5 // pred_fallthru
        _
    $region6: #{vision_encoder_forward.1} parent=1 // loop_footer
      %s24 = sadd.s32 1, %s20
    $region7: #{vision_encoder_forward.1} parent=1 // loop_footer_branch
      %19 = sbr.rel target = $region3
    $region8: #{vision_encoder_forward.1} parent=1 // loop_exit
      _
    %2213 = vsyncpa [#allocation3], 1
    %s2214 = scalar_lea.sflag [#allocation3], 1
    %2215 = vsyncpa %s2214, 1

</llo_original>
